<compile_context>
chip_gen: v7x
topology: tpu7x:2x2x1
jax: 0.10.0
libtpu: 0.0.40
codegen_flags: <defaults>
</compile_context>

<pallas_src>
import functools

import jax
import jax.numpy as jnp
from jax import lax
from jax.experimental import pallas as pl
from jax.experimental.pallas import tpu as pltpu


def _gelu_erf(x):
    # PyTorch nn.GELU() default (erf formulation).  Abramowitz & Stegun 7.1.26
    # polynomial (|err| < 1.5e-7) built from abs/exp/where/mul/add; the inner
    # divide goes to the EUP via pl.reciprocal(approx=True) (rel err ~2^-12,
    # well below the bf16-matmul noise floor).
    a1, a2, a3, a4, a5 = (0.254829592, -0.284496736, 1.421413741,
                          -1.453152027, 1.061405429)
    p = 0.3275911
    u = x * 0.7071067811865476
    au = jnp.abs(u)
    t = pl.reciprocal(1.0 + p * au, approx=True)
    poly = t * (a1 + t * (a2 + t * (a3 + t * (a4 + t * a5))))
    erf = 1.0 - poly * jnp.exp(-au * au)
    erf = jnp.where(u < 0.0, -erf, erf)
    return 0.5 * x * (1.0 + erf)


def decoder_stack_kernel(x_ref, wqkv_ref, bqkv_ref, wo_ref, bo_ref,
                         w1_ref, b1_ref, w2_ref, b2_ref, o_ref,
                         *, num_heads, eps):
    layer = pl.program_id(1)

    # First layer for this batch block: seed the residual-stream carry from x.
    @pl.when(layer == 0)
    def _():
        o_ref[...] = x_ref[...]

    Bb, S, D = o_ref.shape
    H = num_heads
    hd = D // H

    x = o_ref[...].astype(jnp.float32)          # (Bb, S, D) residual carry
    xf = x.reshape(Bb * S, D)                   # token-major for projections

    # ---- LayerNorm 1 (affine folded into wqkv / bqkv by the wrapper) ----
    mu = jnp.mean(xf, axis=-1, keepdims=True)
    var = jnp.mean((xf - mu) ** 2, axis=-1, keepdims=True)
    h = (xf - mu) * lax.rsqrt(var + eps)

    # ---- fused QKV projection: bf16 MXU operands, f32 accumulation ----
    # (1/sqrt(hd) query scale is pre-folded into the Q columns of wqkv/bqkv.)
    qkv = jnp.dot(h.astype(jnp.bfloat16), wqkv_ref[0],
                  preferred_element_type=jnp.float32) + bqkv_ref[0]   # (Bb*S, 3D)

    q = qkv[:, :D].astype(jnp.bfloat16).reshape(Bb, S, D)
    k = qkv[:, D:2 * D].astype(jnp.bfloat16).reshape(Bb, S, D)
    v = qkv[:, 2 * D:].astype(jnp.bfloat16).reshape(Bb, S, D)

    # ---- causal mask: built once per layer, head/batch invariant ----
    rows = lax.broadcasted_iota(jnp.int32, (1, S, S), 1)
    cols = lax.broadcasted_iota(jnp.int32, (1, S, S), 2)
    neg_mask = jnp.where(cols <= rows, 0.0, -1e30).astype(jnp.float32)  # (1,S,S)

    # ---- causal attention: per-head loop (no (H,S,S) temporaries, no stacks) --
    ctx_chunks = []
    for hh in range(H):
        sl = slice(hh * hd, (hh + 1) * hd)
        scores = jnp.einsum('bqd,bkd->bqk', q[:, :, sl], k[:, :, sl],
                            preferred_element_type=jnp.float32)         # (Bb,S,S)
        scores = scores + neg_mask
        scores = scores - jnp.max(scores, axis=-1, keepdims=True)
        p = jnp.exp(scores)
        p = p * pl.reciprocal(jnp.sum(p, axis=-1, keepdims=True), approx=True)
        ctx_chunks.append(
            jnp.einsum('bqk,bkd->bqd', p.astype(jnp.bfloat16), v[:, :, sl],
                       preferred_element_type=jnp.float32))             # (Bb,S,hd)

    ctx = jnp.concatenate(ctx_chunks, axis=-1).reshape(Bb * S, D)

    # ---- output projection: one (Bb*S, D) @ (D, D) matmul (K = D) ----
    attn = jnp.dot(ctx.astype(jnp.bfloat16), wo_ref[0],
                   preferred_element_type=jnp.float32) + bo_ref[0]
    xf = xf + attn                                                       # residual 1

    # ---- LayerNorm 2 (affine folded into w1 / b1 by the wrapper) ----
    mu2 = jnp.mean(xf, axis=-1, keepdims=True)
    var2 = jnp.mean((xf - mu2) ** 2, axis=-1, keepdims=True)
    h2 = (xf - mu2) * lax.rsqrt(var2 + eps)

    # ---- MLP: Linear(D->4D) -> GELU(erf) -> Linear(4D->D) ----
    m = jnp.dot(h2.astype(jnp.bfloat16), w1_ref[0],
                preferred_element_type=jnp.float32) + b1_ref[0]
    m = _gelu_erf(m)
    m = jnp.dot(m.astype(jnp.bfloat16), w2_ref[0],
                preferred_element_type=jnp.float32) + b2_ref[0]
    xf = xf + m                                                          # residual 2

    o_ref[...] = xf.reshape(Bb, S, D).astype(o_ref.dtype)


def _physical_vmem_bytes():
    try:
        return int(pltpu.get_tpu_info().vmem_capacity_bytes)
    except Exception:
        return 128 << 20   # v5e/v6e default; conservative fallback


def _vmem_limit_bytes(Bb, S, D, phys_vmem):
    """Double-buffered bf16 weights + resident f32 activations (per-head scores)."""
    weights = 2 * 24 * D * D                 # 2x-buffered bf16 wqkv+wo+w1+w2
    small = 2 * 9 * D * 4                    # biases
    acts = 4 * Bb * S * (16 * D + 2 * S)     # x, qkv, ctx, mlp, per-head scores
    total = int((weights + small + acts + 4 * Bb * S * D) * 1.5) + (2 << 20)
    # Leave headroom below physical VMEM (56 MiB cap on v7x, ~120 MiB on v5e/v6e),
    # never below the default scoped limit.
    return max(min(total, phys_vmem - (8 << 20)), 32 << 20)


def _layer_spec(p, pipeline_mode=None):
    """Per-layer weight block: (1, ...) indexed by the layer grid axis."""
    block = (1,) + tuple(p.shape[1:])
    nz = p.ndim - 1

    def idx_map(b, l, _nz=nz):
        return (l,) + (0,) * _nz

    if pipeline_mode is None:
        return pl.BlockSpec(block, idx_map)
    return pl.BlockSpec(block, idx_map, pipeline_mode=pipeline_mode)


def decoder_forward(x, stacked_params, *, num_heads, eps=1e-5):
    """Full numLayers decoder stack in ONE pallas_call, grid = (batch_blocks, L)."""
    B, S, D = x.shape
    L = stacked_params[0].shape[0]

    # Split the batch across at most 2 blocks so v7x's two TensorCores both get
    # work; weights are re-DMA'd at most twice per layer (vs. B times before).
    nb = 2 if (B % 2 == 0 and B >= 2) else 1
    bb = B // nb

    phys_vmem = _physical_vmem_bytes()
    # Double-buffered bf16 weights cost 48*D^2 bytes; if that exceeds half of
    # physical VMEM (e.g. D>=1024 on v7x), single-buffer the big weight blocks.
    weight_mode = pl.Buffered(1) if (48 * D * D > phys_vmem // 2) else None

    in_specs = [pl.BlockSpec((bb, S, D), lambda b, l: (b, 0, 0))]
    for p in stacked_params:
        mode = weight_mode if p.dtype == jnp.bfloat16 else None
        in_specs.append(_layer_spec(p, mode))
    out_spec = pl.BlockSpec((bb, S, D), lambda b, l: (b, 0, 0))

    kernel = functools.partial(decoder_stack_kernel, num_heads=num_heads, eps=eps)

    return pl.pallas_call(
        kernel,
        out_shape=jax.ShapeDtypeStruct((B, S, D), x.dtype),
        grid_spec=pltpu.PrefetchScalarGridSpec(
            num_scalar_prefetch=0,
            grid=(nb, L),
            in_specs=in_specs,
            out_specs=out_spec,
        ),
        compiler_params=pltpu.CompilerParams(
            dimension_semantics=("parallel", "arbitrary"),
            vmem_limit_bytes=_vmem_limit_bytes(bb, S, D, phys_vmem),
        ),
    )(x, *stacked_params)


def init_block_params(key, embedding_dim, dtype=jnp.float32):
    """Per-layer parameters matching the PyTorch DecoderBlock layout."""
    D = embedding_dim
    k = jax.random.split(key, 4)
    scale = 0.02
    ln1_g = jnp.ones((D,), jnp.float32)
    ln1_b = jnp.zeros((D,), jnp.float32)
    w_qkv = (scale * jax.random.normal(k[0], (D, 3 * D))).astype(dtype)
    b_qkv = jnp.zeros((3 * D,), jnp.float32)
    w_o = (scale * jax.random.normal(k[1], (D, D))).astype(dtype)
    b_o = jnp.zeros((D,), jnp.float32)
    ln2_g = jnp.ones((D,), jnp.float32)
    ln2_b = jnp.zeros((D,), jnp.float32)
    w1 = (scale * jax.random.normal(k[2], (D, 4 * D))).astype(dtype)
    b1 = jnp.zeros((4 * D,), jnp.float32)
    w2 = (scale * jax.random.normal(k[3], (4 * D, D))).astype(dtype)
    b2 = jnp.zeros((D,), jnp.float32)
    return [ln1_g, ln1_b, w_qkv, b_qkv, w_o, b_o, ln2_g, ln2_b, w1, b1, w2, b2]


def stack_layer_params(layer_params, num_heads):
    """Stack per-layer params on a leading layer axis and prep kernel layouts.

    * LN1 gamma/beta are folded into w_qkv/b_qkv, LN2 gamma/beta into w1/b1
      (exact math, done once at prep time in f32).
    * 1/sqrt(head_dim) is folded into the Q columns of w_qkv/b_qkv.
    * Big matmul weights -> bf16 (MXU operands; f32 accumulate in-kernel).
    * 1-D biases get a unit row so every kernel block keeps a lane-dense last dim.
    """
    D = layer_params[0][2].shape[0]
    hd = D // num_heads
    q_scale = 1.0 / (float(hd) ** 0.5)

    wqkv_l, bqkv_l, wo_l, bo_l, w1_l, b1_l, w2_l, b2_l = ([] for _ in range(8))
    for (ln1_g, ln1_b, w_qkv, b_qkv, w_o, b_o,
         ln2_g, ln2_b, w1, b1, w2, b2) in layer_params:
        w_qkv = w_qkv.astype(jnp.float32)
        w1 = w1.astype(jnp.float32)
        # fold LN1 affine into the QKV projection
        wq = ln1_g[:, None] * w_qkv
        bq = ln1_b @ w_qkv + b_qkv.astype(jnp.float32)
        # fold the attention query scale into the Q columns
        wq = wq.at[:, :D].multiply(q_scale)
        bq = bq.at[:D].multiply(q_scale)
        # fold LN2 affine into the MLP fc1
        wm = ln2_g[:, None] * w1
        bm = ln2_b @ w1 + b1.astype(jnp.float32)

        wqkv_l.append(wq); bqkv_l.append(bq)
        wo_l.append(w_o.astype(jnp.float32)); bo_l.append(b_o.astype(jnp.float32))
        w1_l.append(wm); b1_l.append(bm)
        w2_l.append(w2.astype(jnp.float32)); b2_l.append(b2.astype(jnp.float32))

    def stack_w(lst):
        return jnp.stack(lst, axis=0).astype(jnp.bfloat16)            # (L, in, out)

    def stack_b(lst):
        p = jnp.stack(lst, axis=0).astype(jnp.float32)                 # (L, out)
        return p.reshape(p.shape[0], 1, p.shape[1])                    # (L, 1, out)

    return [stack_w(wqkv_l), stack_b(bqkv_l),
            stack_w(wo_l), stack_b(bo_l),
            stack_w(w1_l), stack_b(b1_l),
            stack_w(w2_l), stack_b(b2_l)]


if __name__ == "__main__":
    # Small shapes consistent with the module's constructor arguments.
    batchSize = 2
    contextLength = 8
    embeddingDim = 32
    numHeads = 4
    numLayers = 2
    dtype = jnp.float32

    root = jax.random.PRNGKey(0)
    x_key, *layer_keys = jax.random.split(root, numLayers + 1)

    x = jax.random.normal(x_key, (batchSize, contextLength, embeddingDim), dtype)
    layer_params = [init_block_params(k, embeddingDim, dtype=dtype)
                    for k in layer_keys]
    stacked = stack_layer_params(layer_params, numHeads)

    out = decoder_forward(x, stacked, num_heads=numHeads)
    out = jax.block_until_ready(out)

    assert out.shape == (batchSize, contextLength, embeddingDim)
    assert bool(jnp.all(jnp.isfinite(out)))
    print("KERNEL_OK")
</pallas_src>

<mosaic_0001>
module attributes {stable_mosaic.version = 11 : i64} {
  func.func @decoder_stack_kernel(%arg0: i32, %arg1: i32, %arg2: memref<1x8x32xf32, #tpu.memory_space<vmem>>, %arg3: memref<1x32x96xbf16, #tpu.memory_space<vmem>>, %arg4: memref<1x1x96xf32, #tpu.memory_space<vmem>>, %arg5: memref<1x32x32xbf16, #tpu.memory_space<vmem>>, %arg6: memref<1x1x32xf32, #tpu.memory_space<vmem>>, %arg7: memref<1x32x128xbf16, #tpu.memory_space<vmem>>, %arg8: memref<1x1x128xf32, #tpu.memory_space<vmem>>, %arg9: memref<1x128x32xbf16, #tpu.memory_space<vmem>>, %arg10: memref<1x1x32xf32, #tpu.memory_space<vmem>>, %arg11: memref<1x8x32xf32, #tpu.memory_space<vmem>>) attributes {dimension_semantics = [#tpu.dimension_semantics<parallel>, #tpu.dimension_semantics<arbitrary>], iteration_bounds = array<i64: 2, 2>, scalar_prefetch = 0 : i64, scratch_operands = 0 : i64, tpu.core_type = #tpu.core_type<tc>, window_params = [{transform_indices = @transform_0, window_bounds = array<i64: 1, 8, 32>}, {transform_indices = @transform_1, window_bounds = array<i64: 1, 32, 96>}, {transform_indices = @transform_2, window_bounds = array<i64: 1, 1, 96>}, {transform_indices = @transform_3, window_bounds = array<i64: 1, 32, 32>}, {transform_indices = @transform_4, window_bounds = array<i64: 1, 1, 32>}, {transform_indices = @transform_5, window_bounds = array<i64: 1, 32, 128>}, {transform_indices = @transform_6, window_bounds = array<i64: 1, 1, 128>}, {transform_indices = @transform_7, window_bounds = array<i64: 1, 128, 32>}, {transform_indices = @transform_8, window_bounds = array<i64: 1, 1, 32>}, {transform_indices = @transform_9, window_bounds = array<i64: 1, 8, 32>}]} {
    %c0_i32 = arith.constant 0 : i32
    %0 = arith.cmpi eq, %arg1, %c0_i32 : i32
    %1 = arith.extui %0 : i1 to i32
    %c0_i32_0 = arith.constant 0 : i32
    %2 = arith.cmpi ne, %1, %c0_i32_0 : i32
    scf.if %2 {
      %c0_75 = arith.constant 0 : index
      %c0_76 = arith.constant 0 : index
      %c0_77 = arith.constant 0 : index
      %201 = vector.load %arg2[%c0_75, %c0_76, %c0_77] : memref<1x8x32xf32, #tpu.memory_space<vmem>>, vector<1x8x32xf32>
      %c0_78 = arith.constant 0 : index
      %c0_79 = arith.constant 0 : index
      %c0_80 = arith.constant 0 : index
      %202 = vector.load %arg11[%c0_78, %c0_79, %c0_80] : memref<1x8x32xf32, #tpu.memory_space<vmem>>, vector<1x8x32xf32>
      tpu.vector_store %arg11[%c0_78, %c0_79, %c0_80], %201 {strides = array<i32>} : memref<1x8x32xf32, #tpu.memory_space<vmem>>, vector<1x8x32xf32>,
    } else {
    }
    %c0 = arith.constant 0 : index
    %c0_1 = arith.constant 0 : index
    %c0_2 = arith.constant 0 : index
    %3 = vector.load %arg11[%c0, %c0_1, %c0_2] : memref<1x8x32xf32, #tpu.memory_space<vmem>>, vector<1x8x32xf32>
    %4 = vector.shape_cast %3 : vector<1x8x32xf32> to vector<8x32xf32>
    %cst = arith.constant dense<0.000000e+00> : vector<8xf32>
    %5 = vector.multi_reduction <add>, %4, %cst [1] : vector<8x32xf32> to vector<8xf32>
    %6 = vector.shape_cast %5 : vector<8xf32> to vector<8x1xf32>
    %cst_3 = arith.constant 3.200000e+01 : f32
    %7 = vector.broadcast %cst_3 : f32 to vector<8x1xf32>
    %8 = arith.divf %6, %7 : vector<8x1xf32>
    %9 = vector.broadcast %8 : vector<8x1xf32> to vector<8x32xf32>
    %10 = arith.subf %4, %9 : vector<8x32xf32>
    %11 = arith.mulf %10, %10 : vector<8x32xf32>
    %cst_4 = arith.constant dense<0.000000e+00> : vector<8xf32>
    %12 = vector.multi_reduction <add>, %11, %cst_4 [1] : vector<8x32xf32> to vector<8xf32>
    %13 = vector.shape_cast %12 : vector<8xf32> to vector<8x1xf32>
    %cst_5 = arith.constant 3.200000e+01 : f32
    %14 = vector.broadcast %cst_5 : f32 to vector<8x1xf32>
    %15 = arith.divf %13, %14 : vector<8x1xf32>
    %16 = vector.broadcast %8 : vector<8x1xf32> to vector<8x32xf32>
    %17 = arith.subf %4, %16 : vector<8x32xf32>
    %cst_6 = arith.constant 9.99999974E-6 : f32
    %18 = vector.broadcast %cst_6 : f32 to vector<8x1xf32>
    %19 = arith.addf %15, %18 : vector<8x1xf32>
    %20 = math.rsqrt %19 : vector<8x1xf32>
    %21 = vector.broadcast %20 : vector<8x1xf32> to vector<8x32xf32>
    %22 = arith.mulf %17, %21 : vector<8x32xf32>
    %23 = arith.truncf %22 : vector<8x32xf32> to vector<8x32xbf16>
    %c0_7 = arith.constant 0 : index
    %c0_8 = arith.constant 0 : index
    %c0_9 = arith.constant 0 : index
    %24 = vector.load %arg3[%c0_7, %c0_8, %c0_9] : memref<1x32x96xbf16, #tpu.memory_space<vmem>>, vector<1x32x96xbf16>
    %25 = vector.shape_cast %24 : vector<1x32x96xbf16> to vector<32x96xbf16>
    %cst_10 = arith.constant dense<0.000000e+00> : vector<8x96xf32>
    %26 = tpu.matmul %23, %25, %cst_10 {dimension_numbers = #tpu.dot_dimension_numbers<[1], [0], [0], [1], [0, 0, 1, 1], [], []>} : vector<8x32xbf16>, vector<32x96xbf16>, vector<8x96xf32> -> vector<8x96xf32>
    %c0_11 = arith.constant 0 : index
    %c0_12 = arith.constant 0 : index
    %c0_13 = arith.constant 0 : index
    %27 = vector.load %arg4[%c0_11, %c0_12, %c0_13] : memref<1x1x96xf32, #tpu.memory_space<vmem>>, vector<1x1x96xf32>
    %28 = vector.shape_cast %27 : vector<1x1x96xf32> to vector<1x96xf32>
    %29 = vector.broadcast %28 : vector<1x96xf32> to vector<8x96xf32>
    %30 = arith.addf %26, %29 : vector<8x96xf32>
    %31 = vector.extract_strided_slice %30 {offsets = [0, 0], sizes = [8, 32], strides = [1, 1]} : vector<8x96xf32> to vector<8x32xf32>
    %32 = arith.truncf %31 : vector<8x32xf32> to vector<8x32xbf16>
    %33 = vector.shape_cast %32 : vector<8x32xbf16> to vector<1x8x32xbf16>
    %34 = vector.extract_strided_slice %30 {offsets = [0, 32], sizes = [8, 32], strides = [1, 1]} : vector<8x96xf32> to vector<8x32xf32>
    %35 = arith.truncf %34 : vector<8x32xf32> to vector<8x32xbf16>
    %36 = vector.shape_cast %35 : vector<8x32xbf16> to vector<1x8x32xbf16>
    %37 = vector.extract_strided_slice %30 {offsets = [0, 64], sizes = [8, 32], strides = [1, 1]} : vector<8x96xf32> to vector<8x32xf32>
    %38 = arith.truncf %37 : vector<8x32xf32> to vector<8x32xbf16>
    %39 = vector.shape_cast %38 : vector<8x32xbf16> to vector<1x8x32xbf16>
    %40 = tpu.iota {dimensions = array<i32: 1>} : vector<1x8x8xi32>
    %41 = tpu.iota {dimensions = array<i32: 2>} : vector<1x8x8xi32>
    %42 = arith.cmpi sle, %41, %40 : vector<1x8x8xi32>
    %cst_14 = arith.constant 0.000000e+00 : f32
    %cst_15 = arith.constant -1.000000e+30 : f32
    %43 = vector.broadcast %cst_14 : f32 to vector<1x8x8xf32>
    %44 = vector.broadcast %cst_15 : f32 to vector<1x8x8xf32>
    %45 = arith.select %42, %43, %44 : vector<1x8x8xi1>, vector<1x8x8xf32>
    %46 = vector.extract_strided_slice %33 {offsets = [0, 0, 0], sizes = [1, 8, 8], strides = [1, 1, 1]} : vector<1x8x32xbf16> to vector<1x8x8xbf16>
    %47 = vector.extract_strided_slice %36 {offsets = [0, 0, 0], sizes = [1, 8, 8], strides = [1, 1, 1]} : vector<1x8x32xbf16> to vector<1x8x8xbf16>
    "tpu.trace_start"() <{level = 10 : i32, message = "bqd,bkd->bqk"}> : () -> ()
    %cst_16 = arith.constant dense<0.000000e+00> : vector<1x8x8xf32>
    %48 = tpu.matmul %46, %47, %cst_16 {dimension_numbers = #tpu.dot_dimension_numbers<[2], [2], [1], [1], [0, 0, 0, 1, 1, 1], [0], [0]>} : vector<1x8x8xbf16>, vector<1x8x8xbf16>, vector<1x8x8xf32> -> vector<1x8x8xf32>
    "tpu.trace_stop"() : () -> ()
    %49 = arith.addf %48, %45 : vector<1x8x8xf32>
    %cst_17 = arith.constant dense<0xFF800000> : vector<1x8xf32>
    %50 = vector.multi_reduction <maximumf>, %49, %cst_17 [2] : vector<1x8x8xf32> to vector<1x8xf32>
    %51 = vector.shape_cast %50 : vector<1x8xf32> to vector<1x8x1xf32>
    %52 = vector.broadcast %51 : vector<1x8x1xf32> to vector<1x8x8xf32>
    %53 = arith.subf %49, %52 : vector<1x8x8xf32>
    %54 = math.exp %53 : vector<1x8x8xf32>
    %cst_18 = arith.constant dense<0.000000e+00> : vector<1x8xf32>
    %55 = vector.multi_reduction <add>, %54, %cst_18 [2] : vector<1x8x8xf32> to vector<1x8xf32>
    %56 = vector.shape_cast %55 : vector<1x8xf32> to vector<1x8x1xf32>
    %57 = tpu.reciprocal %56 {approx = true} : vector<1x8x1xf32> -> vector<1x8x1xf32>
    %58 = vector.broadcast %57 : vector<1x8x1xf32> to vector<1x8x8xf32>
    %59 = arith.mulf %54, %58 : vector<1x8x8xf32>
    %60 = arith.truncf %59 : vector<1x8x8xf32> to vector<1x8x8xbf16>
    %61 = vector.extract_strided_slice %39 {offsets = [0, 0, 0], sizes = [1, 8, 8], strides = [1, 1, 1]} : vector<1x8x32xbf16> to vector<1x8x8xbf16>
    "tpu.trace_start"() <{level = 10 : i32, message = "bqk,bkd->bqd"}> : () -> ()
    %cst_19 = arith.constant dense<0.000000e+00> : vector<1x8x8xf32>
    %62 = tpu.matmul %60, %61, %cst_19 {dimension_numbers = #tpu.dot_dimension_numbers<[2], [1], [1], [2], [0, 0, 0, 1, 1, 2], [0], [0]>} : vector<1x8x8xbf16>, vector<1x8x8xbf16>, vector<1x8x8xf32> -> vector<1x8x8xf32>
    "tpu.trace_stop"() : () -> ()
    %63 = vector.extract_strided_slice %33 {offsets = [0, 0, 8], sizes = [1, 8, 8], strides = [1, 1, 1]} : vector<1x8x32xbf16> to vector<1x8x8xbf16>
    %64 = vector.extract_strided_slice %36 {offsets = [0, 0, 8], sizes = [1, 8, 8], strides = [1, 1, 1]} : vector<1x8x32xbf16> to vector<1x8x8xbf16>
    "tpu.trace_start"() <{level = 10 : i32, message = "bqd,bkd->bqk"}> : () -> ()
    %cst_20 = arith.constant dense<0.000000e+00> : vector<1x8x8xf32>
    %65 = tpu.matmul %63, %64, %cst_20 {dimension_numbers = #tpu.dot_dimension_numbers<[2], [2], [1], [1], [0, 0, 0, 1, 1, 1], [0], [0]>} : vector<1x8x8xbf16>, vector<1x8x8xbf16>, vector<1x8x8xf32> -> vector<1x8x8xf32>
    "tpu.trace_stop"() : () -> ()
    %66 = arith.addf %65, %45 : vector<1x8x8xf32>
    %cst_21 = arith.constant dense<0xFF800000> : vector<1x8xf32>
    %67 = vector.multi_reduction <maximumf>, %66, %cst_21 [2] : vector<1x8x8xf32> to vector<1x8xf32>
    %68 = vector.shape_cast %67 : vector<1x8xf32> to vector<1x8x1xf32>
    %69 = vector.broadcast %68 : vector<1x8x1xf32> to vector<1x8x8xf32>
    %70 = arith.subf %66, %69 : vector<1x8x8xf32>
    %71 = math.exp %70 : vector<1x8x8xf32>
    %cst_22 = arith.constant dense<0.000000e+00> : vector<1x8xf32>
    %72 = vector.multi_reduction <add>, %71, %cst_22 [2] : vector<1x8x8xf32> to vector<1x8xf32>
    %73 = vector.shape_cast %72 : vector<1x8xf32> to vector<1x8x1xf32>
    %74 = tpu.reciprocal %73 {approx = true} : vector<1x8x1xf32> -> vector<1x8x1xf32>
    %75 = vector.broadcast %74 : vector<1x8x1xf32> to vector<1x8x8xf32>
    %76 = arith.mulf %71, %75 : vector<1x8x8xf32>
    %77 = arith.truncf %76 : vector<1x8x8xf32> to vector<1x8x8xbf16>
    %78 = vector.extract_strided_slice %39 {offsets = [0, 0, 8], sizes = [1, 8, 8], strides = [1, 1, 1]} : vector<1x8x32xbf16> to vector<1x8x8xbf16>
    "tpu.trace_start"() <{level = 10 : i32, message = "bqk,bkd->bqd"}> : () -> ()
    %cst_23 = arith.constant dense<0.000000e+00> : vector<1x8x8xf32>
    %79 = tpu.matmul %77, %78, %cst_23 {dimension_numbers = #tpu.dot_dimension_numbers<[2], [1], [1], [2], [0, 0, 0, 1, 1, 2], [0], [0]>} : vector<1x8x8xbf16>, vector<1x8x8xbf16>, vector<1x8x8xf32> -> vector<1x8x8xf32>
    "tpu.trace_stop"() : () -> ()
    %80 = vector.extract_strided_slice %33 {offsets = [0, 0, 16], sizes = [1, 8, 8], strides = [1, 1, 1]} : vector<1x8x32xbf16> to vector<1x8x8xbf16>
    %81 = vector.extract_strided_slice %36 {offsets = [0, 0, 16], sizes = [1, 8, 8], strides = [1, 1, 1]} : vector<1x8x32xbf16> to vector<1x8x8xbf16>
    "tpu.trace_start"() <{level = 10 : i32, message = "bqd,bkd->bqk"}> : () -> ()
    %cst_24 = arith.constant dense<0.000000e+00> : vector<1x8x8xf32>
    %82 = tpu.matmul %80, %81, %cst_24 {dimension_numbers = #tpu.dot_dimension_numbers<[2], [2], [1], [1], [0, 0, 0, 1, 1, 1], [0], [0]>} : vector<1x8x8xbf16>, vector<1x8x8xbf16>, vector<1x8x8xf32> -> vector<1x8x8xf32>
    "tpu.trace_stop"() : () -> ()
    %83 = arith.addf %82, %45 : vector<1x8x8xf32>
    %cst_25 = arith.constant dense<0xFF800000> : vector<1x8xf32>
    %84 = vector.multi_reduction <maximumf>, %83, %cst_25 [2] : vector<1x8x8xf32> to vector<1x8xf32>
    %85 = vector.shape_cast %84 : vector<1x8xf32> to vector<1x8x1xf32>
    %86 = vector.broadcast %85 : vector<1x8x1xf32> to vector<1x8x8xf32>
    %87 = arith.subf %83, %86 : vector<1x8x8xf32>
    %88 = math.exp %87 : vector<1x8x8xf32>
    %cst_26 = arith.constant dense<0.000000e+00> : vector<1x8xf32>
    %89 = vector.multi_reduction <add>, %88, %cst_26 [2] : vector<1x8x8xf32> to vector<1x8xf32>
    %90 = vector.shape_cast %89 : vector<1x8xf32> to vector<1x8x1xf32>
    %91 = tpu.reciprocal %90 {approx = true} : vector<1x8x1xf32> -> vector<1x8x1xf32>
    %92 = vector.broadcast %91 : vector<1x8x1xf32> to vector<1x8x8xf32>
    %93 = arith.mulf %88, %92 : vector<1x8x8xf32>
    %94 = arith.truncf %93 : vector<1x8x8xf32> to vector<1x8x8xbf16>
    %95 = vector.extract_strided_slice %39 {offsets = [0, 0, 16], sizes = [1, 8, 8], strides = [1, 1, 1]} : vector<1x8x32xbf16> to vector<1x8x8xbf16>
    "tpu.trace_start"() <{level = 10 : i32, message = "bqk,bkd->bqd"}> : () -> ()
    %cst_27 = arith.constant dense<0.000000e+00> : vector<1x8x8xf32>
    %96 = tpu.matmul %94, %95, %cst_27 {dimension_numbers = #tpu.dot_dimension_numbers<[2], [1], [1], [2], [0, 0, 0, 1, 1, 2], [0], [0]>} : vector<1x8x8xbf16>, vector<1x8x8xbf16>, vector<1x8x8xf32> -> vector<1x8x8xf32>
    "tpu.trace_stop"() : () -> ()
    %97 = vector.extract_strided_slice %33 {offsets = [0, 0, 24], sizes = [1, 8, 8], strides = [1, 1, 1]} : vector<1x8x32xbf16> to vector<1x8x8xbf16>
    %98 = vector.extract_strided_slice %36 {offsets = [0, 0, 24], sizes = [1, 8, 8], strides = [1, 1, 1]} : vector<1x8x32xbf16> to vector<1x8x8xbf16>
    "tpu.trace_start"() <{level = 10 : i32, message = "bqd,bkd->bqk"}> : () -> ()
    %cst_28 = arith.constant dense<0.000000e+00> : vector<1x8x8xf32>
    %99 = tpu.matmul %97, %98, %cst_28 {dimension_numbers = #tpu.dot_dimension_numbers<[2], [2], [1], [1], [0, 0, 0, 1, 1, 1], [0], [0]>} : vector<1x8x8xbf16>, vector<1x8x8xbf16>, vector<1x8x8xf32> -> vector<1x8x8xf32>
    "tpu.trace_stop"() : () -> ()
    %100 = arith.addf %99, %45 : vector<1x8x8xf32>
    %cst_29 = arith.constant dense<0xFF800000> : vector<1x8xf32>
    %101 = vector.multi_reduction <maximumf>, %100, %cst_29 [2] : vector<1x8x8xf32> to vector<1x8xf32>
    %102 = vector.shape_cast %101 : vector<1x8xf32> to vector<1x8x1xf32>
    %103 = vector.broadcast %102 : vector<1x8x1xf32> to vector<1x8x8xf32>
    %104 = arith.subf %100, %103 : vector<1x8x8xf32>
    %105 = math.exp %104 : vector<1x8x8xf32>
    %cst_30 = arith.constant dense<0.000000e+00> : vector<1x8xf32>
    %106 = vector.multi_reduction <add>, %105, %cst_30 [2] : vector<1x8x8xf32> to vector<1x8xf32>
    %107 = vector.shape_cast %106 : vector<1x8xf32> to vector<1x8x1xf32>
    %108 = tpu.reciprocal %107 {approx = true} : vector<1x8x1xf32> -> vector<1x8x1xf32>
    %109 = vector.broadcast %108 : vector<1x8x1xf32> to vector<1x8x8xf32>
    %110 = arith.mulf %105, %109 : vector<1x8x8xf32>
    %111 = arith.truncf %110 : vector<1x8x8xf32> to vector<1x8x8xbf16>
    %112 = vector.extract_strided_slice %39 {offsets = [0, 0, 24], sizes = [1, 8, 8], strides = [1, 1, 1]} : vector<1x8x32xbf16> to vector<1x8x8xbf16>
    "tpu.trace_start"() <{level = 10 : i32, message = "bqk,bkd->bqd"}> : () -> ()
    %cst_31 = arith.constant dense<0.000000e+00> : vector<1x8x8xf32>
    %113 = tpu.matmul %111, %112, %cst_31 {dimension_numbers = #tpu.dot_dimension_numbers<[2], [1], [1], [2], [0, 0, 0, 1, 1, 2], [0], [0]>} : vector<1x8x8xbf16>, vector<1x8x8xbf16>, vector<1x8x8xf32> -> vector<1x8x8xf32>
    "tpu.trace_stop"() : () -> ()
    %114 = tpu.concatenate %62, %79, %96, %113 in 2 : vector<1x8x8xf32>, vector<1x8x8xf32>, vector<1x8x8xf32>, vector<1x8x8xf32> -> vector<1x8x32xf32>
    %115 = vector.shape_cast %114 : vector<1x8x32xf32> to vector<8x32xf32>
    %116 = arith.truncf %115 : vector<8x32xf32> to vector<8x32xbf16>
    %c0_32 = arith.constant 0 : index
    %c0_33 = arith.constant 0 : index
    %c0_34 = arith.constant 0 : index
    %117 = vector.load %arg5[%c0_32, %c0_33, %c0_34] : memref<1x32x32xbf16, #tpu.memory_space<vmem>>, vector<1x32x32xbf16>
    %118 = vector.shape_cast %117 : vector<1x32x32xbf16> to vector<32x32xbf16>
    %cst_35 = arith.constant dense<0.000000e+00> : vector<8x32xf32>
    %119 = tpu.matmul %116, %118, %cst_35 {dimension_numbers = #tpu.dot_dimension_numbers<[1], [0], [0], [1], [0, 0, 1, 1], [], []>} : vector<8x32xbf16>, vector<32x32xbf16>, vector<8x32xf32> -> vector<8x32xf32>
    %c0_36 = arith.constant 0 : index
    %c0_37 = arith.constant 0 : index
    %c0_38 = arith.constant 0 : index
    %120 = vector.load %arg6[%c0_36, %c0_37, %c0_38] : memref<1x1x32xf32, #tpu.memory_space<vmem>>, vector<1x1x32xf32>
    %121 = vector.shape_cast %120 : vector<1x1x32xf32> to vector<1x32xf32>
    %122 = vector.broadcast %121 : vector<1x32xf32> to vector<8x32xf32>
    %123 = arith.addf %119, %122 : vector<8x32xf32>
    %124 = arith.addf %4, %123 : vector<8x32xf32>
    %cst_39 = arith.constant dense<0.000000e+00> : vector<8xf32>
    %125 = vector.multi_reduction <add>, %124, %cst_39 [1] : vector<8x32xf32> to vector<8xf32>
    %126 = vector.shape_cast %125 : vector<8xf32> to vector<8x1xf32>
    %cst_40 = arith.constant 3.200000e+01 : f32
    %127 = vector.broadcast %cst_40 : f32 to vector<8x1xf32>
    %128 = arith.divf %126, %127 : vector<8x1xf32>
    %129 = vector.broadcast %128 : vector<8x1xf32> to vector<8x32xf32>
    %130 = arith.subf %124, %129 : vector<8x32xf32>
    %131 = arith.mulf %130, %130 : vector<8x32xf32>
    %cst_41 = arith.constant dense<0.000000e+00> : vector<8xf32>
    %132 = vector.multi_reduction <add>, %131, %cst_41 [1] : vector<8x32xf32> to vector<8xf32>
    %133 = vector.shape_cast %132 : vector<8xf32> to vector<8x1xf32>
    %cst_42 = arith.constant 3.200000e+01 : f32
    %134 = vector.broadcast %cst_42 : f32 to vector<8x1xf32>
    %135 = arith.divf %133, %134 : vector<8x1xf32>
    %136 = vector.broadcast %128 : vector<8x1xf32> to vector<8x32xf32>
    %137 = arith.subf %124, %136 : vector<8x32xf32>
    %cst_43 = arith.constant 9.99999974E-6 : f32
    %138 = vector.broadcast %cst_43 : f32 to vector<8x1xf32>
    %139 = arith.addf %135, %138 : vector<8x1xf32>
    %140 = math.rsqrt %139 : vector<8x1xf32>
    %141 = vector.broadcast %140 : vector<8x1xf32> to vector<8x32xf32>
    %142 = arith.mulf %137, %141 : vector<8x32xf32>
    %143 = arith.truncf %142 : vector<8x32xf32> to vector<8x32xbf16>
    %c0_44 = arith.constant 0 : index
    %c0_45 = arith.constant 0 : index
    %c0_46 = arith.constant 0 : index
    %144 = vector.load %arg7[%c0_44, %c0_45, %c0_46] : memref<1x32x128xbf16, #tpu.memory_space<vmem>>, vector<1x32x128xbf16>
    %145 = vector.shape_cast %144 : vector<1x32x128xbf16> to vector<32x128xbf16>
    %cst_47 = arith.constant dense<0.000000e+00> : vector<8x128xf32>
    %146 = tpu.matmul %143, %145, %cst_47 {dimension_numbers = #tpu.dot_dimension_numbers<[1], [0], [0], [1], [0, 0, 1, 1], [], []>} : vector<8x32xbf16>, vector<32x128xbf16>, vector<8x128xf32> -> vector<8x128xf32>
    %c0_48 = arith.constant 0 : index
    %c0_49 = arith.constant 0 : index
    %c0_50 = arith.constant 0 : index
    %147 = vector.load %arg8[%c0_48, %c0_49, %c0_50] : memref<1x1x128xf32, #tpu.memory_space<vmem>>, vector<1x1x128xf32>
    %148 = vector.shape_cast %147 : vector<1x1x128xf32> to vector<1x128xf32>
    %149 = vector.broadcast %148 : vector<1x128xf32> to vector<8x128xf32>
    %150 = arith.addf %146, %149 : vector<8x128xf32>
    %cst_51 = arith.constant 0.707106769 : f32
    %151 = vector.broadcast %cst_51 : f32 to vector<8x128xf32>
    %152 = arith.mulf %150, %151 : vector<8x128xf32>
    %153 = math.absf %152 : vector<8x128xf32>
    %cst_52 = arith.constant 0.327591091 : f32
    %154 = vector.broadcast %cst_52 : f32 to vector<8x128xf32>
    %155 = arith.mulf %154, %153 : vector<8x128xf32>
    %cst_53 = arith.constant 1.000000e+00 : f32
    %156 = vector.broadcast %cst_53 : f32 to vector<8x128xf32>
    %157 = arith.addf %156, %155 : vector<8x128xf32>
    %158 = tpu.reciprocal %157 {approx = true} : vector<8x128xf32> -> vector<8x128xf32>
    %cst_54 = arith.constant 1.06140542 : f32
    %159 = vector.broadcast %cst_54 : f32 to vector<8x128xf32>
    %160 = arith.mulf %158, %159 : vector<8x128xf32>
    %cst_55 = arith.constant -1.45315206 : f32
    %161 = vector.broadcast %cst_55 : f32 to vector<8x128xf32>
    %162 = arith.addf %161, %160 : vector<8x128xf32>
    %163 = arith.mulf %158, %162 : vector<8x128xf32>
    %cst_56 = arith.constant 1.42141378 : f32
    %164 = vector.broadcast %cst_56 : f32 to vector<8x128xf32>
    %165 = arith.addf %164, %163 : vector<8x128xf32>
    %166 = arith.mulf %158, %165 : vector<8x128xf32>
    %cst_57 = arith.constant -0.284496725 : f32
    %167 = vector.broadcast %cst_57 : f32 to vector<8x128xf32>
    %168 = arith.addf %167, %166 : vector<8x128xf32>
    %169 = arith.mulf %158, %168 : vector<8x128xf32>
    %cst_58 = arith.constant 0.254829586 : f32
    %170 = vector.broadcast %cst_58 : f32 to vector<8x128xf32>
    %171 = arith.addf %170, %169 : vector<8x128xf32>
    %172 = arith.mulf %158, %171 : vector<8x128xf32>
    %cst_59 = arith.constant 0.000000e+00 : f32
    %173 = vector.broadcast %cst_59 : f32 to vector<8x128xf32>
    %174 = arith.subf %173, %153 : vector<8x128xf32>
    %175 = arith.mulf %174, %153 : vector<8x128xf32>
    %176 = math.exp %175 : vector<8x128xf32>
    %177 = arith.mulf %172, %176 : vector<8x128xf32>
    %cst_60 = arith.constant 1.000000e+00 : f32
    %178 = vector.broadcast %cst_60 : f32 to vector<8x128xf32>
    %179 = arith.subf %178, %177 : vector<8x128xf32>
    %cst_61 = arith.constant 0.000000e+00 : f32
    %180 = vector.broadcast %cst_61 : f32 to vector<8x128xf32>
    %181 = arith.cmpf olt, %152, %180 : vector<8x128xf32>
    %cst_62 = arith.constant 0.000000e+00 : f32
    %182 = vector.broadcast %cst_62 : f32 to vector<8x128xf32>
    %183 = arith.subf %182, %179 : vector<8x128xf32>
    %184 = arith.select %181, %183, %179 : vector<8x128xi1>, vector<8x128xf32>
    %cst_63 = arith.constant 5.000000e-01 : f32
    %185 = vector.broadcast %cst_63 : f32 to vector<8x128xf32>
    %186 = arith.mulf %185, %150 : vector<8x128xf32>
    %cst_64 = arith.constant 1.000000e+00 : f32
    %187 = vector.broadcast %cst_64 : f32 to vector<8x128xf32>
    %188 = arith.addf %187, %184 : vector<8x128xf32>
    %189 = arith.mulf %186, %188 : vector<8x128xf32>
    %190 = arith.truncf %189 : vector<8x128xf32> to vector<8x128xbf16>
    %c0_65 = arith.constant 0 : index
    %c0_66 = arith.constant 0 : index
    %c0_67 = arith.constant 0 : index
    %191 = vector.load %arg9[%c0_65, %c0_66, %c0_67] : memref<1x128x32xbf16, #tpu.memory_space<vmem>>, vector<1x128x32xbf16>
    %192 = vector.shape_cast %191 : vector<1x128x32xbf16> to vector<128x32xbf16>
    %cst_68 = arith.constant dense<0.000000e+00> : vector<8x32xf32>
    %193 = tpu.matmul %190, %192, %cst_68 {dimension_numbers = #tpu.dot_dimension_numbers<[1], [0], [0], [1], [0, 0, 1, 1], [], []>} : vector<8x128xbf16>, vector<128x32xbf16>, vector<8x32xf32> -> vector<8x32xf32>
    %c0_69 = arith.constant 0 : index
    %c0_70 = arith.constant 0 : index
    %c0_71 = arith.constant 0 : index
    %194 = vector.load %arg10[%c0_69, %c0_70, %c0_71] : memref<1x1x32xf32, #tpu.memory_space<vmem>>, vector<1x1x32xf32>
    %195 = vector.shape_cast %194 : vector<1x1x32xf32> to vector<1x32xf32>
    %196 = vector.broadcast %195 : vector<1x32xf32> to vector<8x32xf32>
    %197 = arith.addf %193, %196 : vector<8x32xf32>
    %198 = arith.addf %124, %197 : vector<8x32xf32>
    %199 = vector.shape_cast %198 : vector<8x32xf32> to vector<1x8x32xf32>
    %c0_72 = arith.constant 0 : index
    %c0_73 = arith.constant 0 : index
    %c0_74 = arith.constant 0 : index
    %200 = vector.load %arg11[%c0_72, %c0_73, %c0_74] : memref<1x8x32xf32, #tpu.memory_space<vmem>>, vector<1x8x32xf32>
    tpu.vector_store %arg11[%c0_72, %c0_73, %c0_74], %199 {strides = array<i32>} : memref<1x8x32xf32, #tpu.memory_space<vmem>>, vector<1x8x32xf32>,
    return
  }
  func.func @transform_0(%arg0: i32, %arg1: i32) -> (i32, i32, i32) {
    %c0_i32 = arith.constant 0 : i32
    %c0_i32_0 = arith.constant 0 : i32
    %c0_i32_1 = arith.constant 0 : i32
    return %arg0, %c0_i32, %c0_i32_0 : i32, i32, i32
  }
  func.func @transform_1(%arg0: i32, %arg1: i32) -> (i32, i32, i32) {
    %c0_i32 = arith.constant 0 : i32
    %c0_i32_0 = arith.constant 0 : i32
    %c0_i32_1 = arith.constant 0 : i32
    return %arg1, %c0_i32, %c0_i32_0 : i32, i32, i32
  }
  func.func @transform_2(%arg0: i32, %arg1: i32) -> (i32, i32, i32) {
    %c0_i32 = arith.constant 0 : i32
    %c0_i32_0 = arith.constant 0 : i32
    %c0_i32_1 = arith.constant 0 : i32
    return %arg1, %c0_i32, %c0_i32_0 : i32, i32, i32
  }
  func.func @transform_3(%arg0: i32, %arg1: i32) -> (i32, i32, i32) {
    %c0_i32 = arith.constant 0 : i32
    %c0_i32_0 = arith.constant 0 : i32
    %c0_i32_1 = arith.constant 0 : i32
    return %arg1, %c0_i32, %c0_i32_0 : i32, i32, i32
  }
  func.func @transform_4(%arg0: i32, %arg1: i32) -> (i32, i32, i32) {
    %c0_i32 = arith.constant 0 : i32
    %c0_i32_0 = arith.constant 0 : i32
    %c0_i32_1 = arith.constant 0 : i32
    return %arg1, %c0_i32, %c0_i32_0 : i32, i32, i32
  }
  func.func @transform_5(%arg0: i32, %arg1: i32) -> (i32, i32, i32) {
    %c0_i32 = arith.constant 0 : i32
    %c0_i32_0 = arith.constant 0 : i32
    %c0_i32_1 = arith.constant 0 : i32
    return %arg1, %c0_i32, %c0_i32_0 : i32, i32, i32
  }
  func.func @transform_6(%arg0: i32, %arg1: i32) -> (i32, i32, i32) {
    %c0_i32 = arith.constant 0 : i32
    %c0_i32_0 = arith.constant 0 : i32
    %c0_i32_1 = arith.constant 0 : i32
    return %arg1, %c0_i32, %c0_i32_0 : i32, i32, i32
  }
  func.func @transform_7(%arg0: i32, %arg1: i32) -> (i32, i32, i32) {
    %c0_i32 = arith.constant 0 : i32
    %c0_i32_0 = arith.constant 0 : i32
    %c0_i32_1 = arith.constant 0 : i32
    return %arg1, %c0_i32, %c0_i32_0 : i32, i32, i32
  }
  func.func @transform_8(%arg0: i32, %arg1: i32) -> (i32, i32, i32) {
    %c0_i32 = arith.constant 0 : i32
    %c0_i32_0 = arith.constant 0 : i32
    %c0_i32_1 = arith.constant 0 : i32
    return %arg1, %c0_i32, %c0_i32_0 : i32, i32, i32
  }
  func.func @transform_9(%arg0: i32, %arg1: i32) -> (i32, i32, i32) {
    %c0_i32 = arith.constant 0 : i32
    %c0_i32_0 = arith.constant 0 : i32
    %c0_i32_1 = arith.constant 0 : i32
    return %arg0, %c0_i32, %c0_i32_0 : i32, i32, i32
  }
}

</mosaic_0001>

<llo_original>
// kernel: tpu_custom_call.1
$region0: #{tpu_custom_call.1}
  #allocation0 [shape = 'u32[]', space=smem, size = 0x4, offset = 0x4, fixed_abs, tag = 'smem constant byte address 0x4 - core index']
  #allocation1 [shape = 'u32[144,128]{1,0:T(1,128)}', space=vmem, size = 0x12000, scoped, tag = 'internal scratch']
  %s0 = inlined_call_operand.vmem [shape: f32[2,8,32], index: 0, kind: input, shape index: {}]
  %s1 = inlined_call_operand.vmem [shape: bf16[2,32,96], index: 1, kind: input, shape index: {}]
  %s2 = inlined_call_operand.vmem [shape: f32[2,1,96], index: 2, kind: input, shape index: {}]
  %s3 = inlined_call_operand.vmem [shape: bf16[2,32,32], index: 3, kind: input, shape index: {}]
  %s4 = inlined_call_operand.vmem [shape: f32[2,1,32], index: 4, kind: input, shape index: {}]
  %s5 = inlined_call_operand.vmem [shape: bf16[2,32,128], index: 5, kind: input, shape index: {}]
  %s6 = inlined_call_operand.vmem [shape: f32[2,1,128], index: 6, kind: input, shape index: {}]
  %s7 = inlined_call_operand.vmem [shape: bf16[2,128,32], index: 7, kind: input, shape index: {}]
  %s8 = inlined_call_operand.vmem [shape: f32[2,1,32], index: 8, kind: input, shape index: {}]
  %s9 = inlined_call_operand.hbm [shape: f32[2,8,32], index: 9, kind: output, shape index: {}]
  %s10 = sld [smem:[#allocation0]]
  $region73: #{tpu_custom_call.1} parent=0
    _
  %s12 = ssub.s32 1, %s10
  %s13 = scalar_select 0, %s12, %s10
  $region1: #{tpu_custom_call.1} parent=0
    #allocation2 [shape = 'u8[8192]{0}', space=vmem, size = 0x2000, scoped, tag = 'output window, operand 0']
    #allocation3 [shape = 's32[2]{0}', space=sflag, size = 0x8, scoped, tag = 'scoped memory for tpu_custom_call.1']
    %14 = vsyncpa [#allocation3], 0
    %s15 = scalar_lea.sflag [#allocation3], 1
    %16 = vsyncpa %s15, 0
    loop: start=0, step=1, limit=6
    $region2: #{tpu_custom_call.1} parent=1 // loop_pre_header
      _
    $region3: #{tpu_custom_call.1} parent=1 // loop_header
      %s18 = sphi 0, %s22
      %p19 = scmp.ge.s32.totalorder %s18, 6
      %s25 = sphi 0, %s37
      %s26 = sphi 0, %s33
      %s27 = sphi 0, %s25
      %s28 = sphi 0, %s26
      %s29 = sphi 0, %s27
      %s30 = sphi 0, %s28
      %s40 = sphi 0, %s42
      %s43 = sphi 0, %s40
      %s44 = sphi 0, %s43
      %s60 = sphi 0, %s44
      %s66 = sphi 0, %s68
      %s69 = sphi 0, %s66
      %s70 = sphi 0, %s69
      %s86 = sphi 0, %s70
      %s92 = sphi 0, %s94
      %s95 = sphi 0, %s92
      %s96 = sphi 0, %s95
      %s112 = sphi 0, %s96
      %s118 = sphi 0, %s120
      %s121 = sphi 0, %s118
      %s122 = sphi 0, %s121
      %s138 = sphi 0, %s122
      %s144 = sphi 0, %s146
      %s147 = sphi 0, %s144
      %s148 = sphi 0, %s147
      %s164 = sphi 0, %s148
      %s170 = sphi 0, %s172
      %s173 = sphi 0, %s170
      %s174 = sphi 0, %s173
      %s190 = sphi 0, %s174
      %s196 = sphi 0, %s198
      %s199 = sphi 0, %s196
      %s200 = sphi 0, %s199
      %s216 = sphi 0, %s200
      %s222 = sphi 0, %s224
      %s225 = sphi 0, %s222
      %s226 = sphi 0, %s225
      %s242 = sphi 0, %s226
      %s248 = sphi 0, %s250
      %s251 = sphi 0, %s248
      %s252 = sphi 0, %s251
      %s268 = sphi 0, %s252
      %s274 = sphi 0, %s276
      %s277 = sphi 0, %s274
      %s278 = sphi 0, %s277
      %s294 = sphi 0, %s278
    $region4: #{tpu_custom_call.1} parent=1 // loop_header_branch
      %21 = sbr.rel (%p19) target = $region8
    $region5: #{tpu_custom_call.1} parent=1 // loop_body
      %s23 = ssub.s32 %s18, 1
      %s24 = ssub.s32 %s18, 2
      %s31 = sadd.s32 1, %s26
      %p32 = scmp.ge.s32.totalorder %s31, 2
      %s33 = scalar_select %p32, 0, %s31
      %s34 = sadd.s32 1, %s25
      %s35 = scalar_select %p32, %s34, %s25
      %p36 = scmp.ge.s32.totalorder %s35, 2
      %s37 = scalar_select %p36, 0, %s35
      %s38 = ssub.s32 %s25, %s37
      %p39 = scmp.eq.s32.totalorder %s38, 0
      %s41 = sadd.s32 %s40, 1
      %s42 = scalar_select %p39, %s40, %s41
      %p45 = pneg %p39
      %p46 = scmp.eq.s32.totalorder %s18, 3
      %p47 = por %p45, %p46
      %p48 = scmp.ne.s32.totalorder %s40, %s43
      %p49 = scmp.eq.s32.totalorder %s18, 0
      %p50 = por %p48, %p49
      %p51 = scmp.ne.s32.totalorder %s40, %s43
      %p52 = scmp.eq.s32.totalorder %s23, 3
      %p53 = por %p51, %p52
      %p54 = scmp.ne.s32.totalorder %s43, %s44
      %p55 = scmp.eq.s32.totalorder %s23, 0
      %p56 = por %p54, %p55
      %p57 = scmp.ne.s32.totalorder %s43, %s44
      %p58 = scmp.eq.s32.totalorder %s24, 3
      %p59 = por %p57, %p58
      %p61 = scmp.ne.s32.totalorder %s44, %s60
      %p62 = scmp.eq.s32.totalorder %s24, 0
      %p63 = por %p61, %p62
      %s64 = ssub.s32 %s26, %s33
      %p65 = scmp.eq.s32.totalorder %s64, 0
      %s67 = sadd.s32 %s66, 1
      %s68 = scalar_select %p65, %s66, %s67
      %p71 = pneg %p65
      %p72 = scmp.eq.s32.totalorder %s18, 3
      %p73 = por %p71, %p72
      %p74 = scmp.ne.s32.totalorder %s66, %s69
      %p75 = scmp.eq.s32.totalorder %s18, 0
      %p76 = por %p74, %p75
      %p77 = scmp.ne.s32.totalorder %s66, %s69
      %p78 = scmp.eq.s32.totalorder %s23, 3
      %p79 = por %p77, %p78
      %p80 = scmp.ne.s32.totalorder %s69, %s70
      %p81 = scmp.eq.s32.totalorder %s23, 0
      %p82 = por %p80, %p81
      %p83 = scmp.ne.s32.totalorder %s69, %s70
      %p84 = scmp.eq.s32.totalorder %s24, 3
      %p85 = por %p83, %p84
      %p87 = scmp.ne.s32.totalorder %s70, %s86
      %p88 = scmp.eq.s32.totalorder %s24, 0
      %p89 = por %p87, %p88
      %s90 = ssub.s32 %s26, %s33
      %p91 = scmp.eq.s32.totalorder %s90, 0
      %s93 = sadd.s32 %s92, 1
      %s94 = scalar_select %p91, %s92, %s93
      %p97 = pneg %p91
      %p98 = scmp.eq.s32.totalorder %s18, 3
      %p99 = por %p97, %p98
      %p100 = scmp.ne.s32.totalorder %s92, %s95
      %p101 = scmp.eq.s32.totalorder %s18, 0
      %p102 = por %p100, %p101
      %p103 = scmp.ne.s32.totalorder %s92, %s95
      %p104 = scmp.eq.s32.totalorder %s23, 3
      %p105 = por %p103, %p104
      %p106 = scmp.ne.s32.totalorder %s95, %s96
      %p107 = scmp.eq.s32.totalorder %s23, 0
      %p108 = por %p106, %p107
      %p109 = scmp.ne.s32.totalorder %s95, %s96
      %p110 = scmp.eq.s32.totalorder %s24, 3
      %p111 = por %p109, %p110
      %p113 = scmp.ne.s32.totalorder %s96, %s112
      %p114 = scmp.eq.s32.totalorder %s24, 0
      %p115 = por %p113, %p114
      %s116 = ssub.s32 %s26, %s33
      %p117 = scmp.eq.s32.totalorder %s116, 0
      %s119 = sadd.s32 %s118, 1
      %s120 = scalar_select %p117, %s118, %s119
      %p123 = pneg %p117
      %p124 = scmp.eq.s32.totalorder %s18, 3
      %p125 = por %p123, %p124
      %p126 = scmp.ne.s32.totalorder %s118, %s121
      %p127 = scmp.eq.s32.totalorder %s18, 0
      %p128 = por %p126, %p127
      %p129 = scmp.ne.s32.totalorder %s118, %s121
      %p130 = scmp.eq.s32.totalorder %s23, 3
      %p131 = por %p129, %p130
      %p132 = scmp.ne.s32.totalorder %s121, %s122
      %p133 = scmp.eq.s32.totalorder %s23, 0
      %p134 = por %p132, %p133
      %p135 = scmp.ne.s32.totalorder %s121, %s122
      %p136 = scmp.eq.s32.totalorder %s24, 3
      %p137 = por %p135, %p136
      %p139 = scmp.ne.s32.totalorder %s122, %s138
      %p140 = scmp.eq.s32.totalorder %s24, 0
      %p141 = por %p139, %p140
      %s142 = ssub.s32 %s26, %s33
      %p143 = scmp.eq.s32.totalorder %s142, 0
      %s145 = sadd.s32 %s144, 1
      %s146 = scalar_select %p143, %s144, %s145
      %p149 = pneg %p143
      %p150 = scmp.eq.s32.totalorder %s18, 3
      %p151 = por %p149, %p150
      %p152 = scmp.ne.s32.totalorder %s144, %s147
      %p153 = scmp.eq.s32.totalorder %s18, 0
      %p154 = por %p152, %p153
      %p155 = scmp.ne.s32.totalorder %s144, %s147
      %p156 = scmp.eq.s32.totalorder %s23, 3
      %p157 = por %p155, %p156
      %p158 = scmp.ne.s32.totalorder %s147, %s148
      %p159 = scmp.eq.s32.totalorder %s23, 0
      %p160 = por %p158, %p159
      %p161 = scmp.ne.s32.totalorder %s147, %s148
      %p162 = scmp.eq.s32.totalorder %s24, 3
      %p163 = por %p161, %p162
      %p165 = scmp.ne.s32.totalorder %s148, %s164
      %p166 = scmp.eq.s32.totalorder %s24, 0
      %p167 = por %p165, %p166
      %s168 = ssub.s32 %s26, %s33
      %p169 = scmp.eq.s32.totalorder %s168, 0
      %s171 = sadd.s32 %s170, 1
      %s172 = scalar_select %p169, %s170, %s171
      %p175 = pneg %p169
      %p176 = scmp.eq.s32.totalorder %s18, 3
      %p177 = por %p175, %p176
      %p178 = scmp.ne.s32.totalorder %s170, %s173
      %p179 = scmp.eq.s32.totalorder %s18, 0
      %p180 = por %p178, %p179
      %p181 = scmp.ne.s32.totalorder %s170, %s173
      %p182 = scmp.eq.s32.totalorder %s23, 3
      %p183 = por %p181, %p182
      %p184 = scmp.ne.s32.totalorder %s173, %s174
      %p185 = scmp.eq.s32.totalorder %s23, 0
      %p186 = por %p184, %p185
      %p187 = scmp.ne.s32.totalorder %s173, %s174
      %p188 = scmp.eq.s32.totalorder %s24, 3
      %p189 = por %p187, %p188
      %p191 = scmp.ne.s32.totalorder %s174, %s190
      %p192 = scmp.eq.s32.totalorder %s24, 0
      %p193 = por %p191, %p192
      %s194 = ssub.s32 %s26, %s33
      %p195 = scmp.eq.s32.totalorder %s194, 0
      %s197 = sadd.s32 %s196, 1
      %s198 = scalar_select %p195, %s196, %s197
      %p201 = pneg %p195
      %p202 = scmp.eq.s32.totalorder %s18, 3
      %p203 = por %p201, %p202
      %p204 = scmp.ne.s32.totalorder %s196, %s199
      %p205 = scmp.eq.s32.totalorder %s18, 0
      %p206 = por %p204, %p205
      %p207 = scmp.ne.s32.totalorder %s196, %s199
      %p208 = scmp.eq.s32.totalorder %s23, 3
      %p209 = por %p207, %p208
      %p210 = scmp.ne.s32.totalorder %s199, %s200
      %p211 = scmp.eq.s32.totalorder %s23, 0
      %p212 = por %p210, %p211
      %p213 = scmp.ne.s32.totalorder %s199, %s200
      %p214 = scmp.eq.s32.totalorder %s24, 3
      %p215 = por %p213, %p214
      %p217 = scmp.ne.s32.totalorder %s200, %s216
      %p218 = scmp.eq.s32.totalorder %s24, 0
      %p219 = por %p217, %p218
      %s220 = ssub.s32 %s26, %s33
      %p221 = scmp.eq.s32.totalorder %s220, 0
      %s223 = sadd.s32 %s222, 1
      %s224 = scalar_select %p221, %s222, %s223
      %p227 = pneg %p221
      %p228 = scmp.eq.s32.totalorder %s18, 3
      %p229 = por %p227, %p228
      %p230 = scmp.ne.s32.totalorder %s222, %s225
      %p231 = scmp.eq.s32.totalorder %s18, 0
      %p232 = por %p230, %p231
      %p233 = scmp.ne.s32.totalorder %s222, %s225
      %p234 = scmp.eq.s32.totalorder %s23, 3
      %p235 = por %p233, %p234
      %p236 = scmp.ne.s32.totalorder %s225, %s226
      %p237 = scmp.eq.s32.totalorder %s23, 0
      %p238 = por %p236, %p237
      %p239 = scmp.ne.s32.totalorder %s225, %s226
      %p240 = scmp.eq.s32.totalorder %s24, 3
      %p241 = por %p239, %p240
      %p243 = scmp.ne.s32.totalorder %s226, %s242
      %p244 = scmp.eq.s32.totalorder %s24, 0
      %p245 = por %p243, %p244
      %s246 = ssub.s32 %s26, %s33
      %p247 = scmp.eq.s32.totalorder %s246, 0
      %s249 = sadd.s32 %s248, 1
      %s250 = scalar_select %p247, %s248, %s249
      %p253 = pneg %p247
      %p254 = scmp.eq.s32.totalorder %s18, 3
      %p255 = por %p253, %p254
      %p256 = scmp.ne.s32.totalorder %s248, %s251
      %p257 = scmp.eq.s32.totalorder %s18, 0
      %p258 = por %p256, %p257
      %p259 = scmp.ne.s32.totalorder %s248, %s251
      %p260 = scmp.eq.s32.totalorder %s23, 3
      %p261 = por %p259, %p260
      %p262 = scmp.ne.s32.totalorder %s251, %s252
      %p263 = scmp.eq.s32.totalorder %s23, 0
      %p264 = por %p262, %p263
      %p265 = scmp.ne.s32.totalorder %s251, %s252
      %p266 = scmp.eq.s32.totalorder %s24, 3
      %p267 = por %p265, %p266
      %p269 = scmp.ne.s32.totalorder %s252, %s268
      %p270 = scmp.eq.s32.totalorder %s24, 0
      %p271 = por %p269, %p270
      %s272 = ssub.s32 %s25, %s37
      %p273 = scmp.eq.s32.totalorder %s272, 0
      %s275 = sadd.s32 %s274, 1
      %s276 = scalar_select %p273, %s274, %s275
      %p279 = pneg %p273
      %p280 = scmp.eq.s32.totalorder %s18, 3
      %p281 = por %p279, %p280
      %p282 = scmp.ne.s32.totalorder %s274, %s277
      %p283 = scmp.eq.s32.totalorder %s18, 0
      %p284 = por %p282, %p283
      %p285 = scmp.ne.s32.totalorder %s274, %s277
      %p286 = scmp.eq.s32.totalorder %s23, 3
      %p287 = por %p285, %p286
      %p288 = scmp.ne.s32.totalorder %s277, %s278
      %p289 = scmp.eq.s32.totalorder %s23, 0
      %p290 = por %p288, %p289
      %p291 = scmp.ne.s32.totalorder %s277, %s278
      %p292 = scmp.eq.s32.totalorder %s24, 3
      %p293 = por %p291, %p292
      %p295 = scmp.ne.s32.totalorder %s278, %s294
      %p296 = scmp.eq.s32.totalorder %s24, 0
      %p297 = por %p295, %p296
      %p298 = scmp.le.s32.totalorder 1, %s18
      %p299 = scmp.lt.s32.totalorder %s18, 5
      %p300 = pnand %p298, %p299
      %p301 = pneg %p300
      // Predicated region
      $region9: #{tpu_custom_call.1} parent=5 // pred_check
        _
      $region10: #{tpu_custom_call.1} parent=5 // pred_check_branch
        %303 = sbr.rel (%p300) target = $region12
      $region11: #{tpu_custom_call.1} parent=5 // pred_region
        %s304 = ssub.s32 %s18, 1
      $region12: #{tpu_custom_call.1} parent=5 // pred_fallthru
        _
      %p305 = scmp.lt.s32.totalorder %s18, 4
      // Predicated region
      $region13: #{tpu_custom_call.1} parent=5 // pred_check
        %p306 = pneg %p305
      $region14: #{tpu_custom_call.1} parent=5 // pred_check_branch
        %308 = sbr.rel (%p306) target = $region16
      $region15: #{tpu_custom_call.1} parent=5 // pred_region
        // Predicated region
        $region17: #{tpu_custom_call.1} parent=15 // pred_check
          %p309 = pneg %p50
        $region18: #{tpu_custom_call.1} parent=15 // pred_check_branch
          %311 = sbr.rel (%p309) target = $region20
        $region19: #{tpu_custom_call.1} parent=15 // pred_region
          %p312 = scmp.lt.s32.totalorder %s25, 1
          %s313 = scalar_select %p312, %s25, 1
          %s314 = smul.addr %s313, 8
          %s315 = scalar_lea.vmem %s0, %s314
        $region20: #{tpu_custom_call.1} parent=15 // pred_fallthru
          _
        // Predicated region
        $region21: #{tpu_custom_call.1} parent=15 // pred_check
          %p316 = pneg %p76
        $region22: #{tpu_custom_call.1} parent=15 // pred_check_branch
          %318 = sbr.rel (%p316) target = $region24
        $region23: #{tpu_custom_call.1} parent=15 // pred_region
          %p319 = scmp.lt.s32.totalorder %s26, 1
          %s320 = scalar_select %p319, %s26, 1
          %s321 = smul.addr %s320, 4
          %s322 = smul.addr %s321, 4
          %s323 = scalar_lea.vmem %s1, %s322
        $region24: #{tpu_custom_call.1} parent=15 // pred_fallthru
          _
        // Predicated region
        $region25: #{tpu_custom_call.1} parent=15 // pred_check
          %p324 = pneg %p102
        $region26: #{tpu_custom_call.1} parent=15 // pred_check_branch
          %326 = sbr.rel (%p324) target = $region28
        $region27: #{tpu_custom_call.1} parent=15 // pred_region
          %p327 = scmp.lt.s32.totalorder %s26, 1
          %s328 = scalar_select %p327, %s26, 1
          %s329 = scalar_lea.vmem %s2, %s328
        $region28: #{tpu_custom_call.1} parent=15 // pred_fallthru
          _
        // Predicated region
        $region29: #{tpu_custom_call.1} parent=15 // pred_check
          %p330 = pneg %p128
        $region30: #{tpu_custom_call.1} parent=15 // pred_check_branch
          %332 = sbr.rel (%p330) target = $region32
        $region31: #{tpu_custom_call.1} parent=15 // pred_region
          %p333 = scmp.lt.s32.totalorder %s26, 1
          %s334 = scalar_select %p333, %s26, 1
          %s335 = smul.addr %s334, 4
          %s336 = smul.addr %s335, 4
          %s337 = scalar_lea.vmem %s3, %s336
        $region32: #{tpu_custom_call.1} parent=15 // pred_fallthru
          _
        // Predicated region
        $region33: #{tpu_custom_call.1} parent=15 // pred_check
          %p338 = pneg %p154
        $region34: #{tpu_custom_call.1} parent=15 // pred_check_branch
          %340 = sbr.rel (%p338) target = $region36
        $region35: #{tpu_custom_call.1} parent=15 // pred_region
          %p341 = scmp.lt.s32.totalorder %s26, 1
          %s342 = scalar_select %p341, %s26, 1
          %s343 = scalar_lea.vmem %s4, %s342
        $region36: #{tpu_custom_call.1} parent=15 // pred_fallthru
          _
        // Predicated region
        $region37: #{tpu_custom_call.1} parent=15 // pred_check
          %p344 = pneg %p180
        $region38: #{tpu_custom_call.1} parent=15 // pred_check_branch
          %346 = sbr.rel (%p344) target = $region40
        $region39: #{tpu_custom_call.1} parent=15 // pred_region
          %p347 = scmp.lt.s32.totalorder %s26, 1
          %s348 = scalar_select %p347, %s26, 1
          %s349 = smul.addr %s348, 4
          %s350 = smul.addr %s349, 4
          %s351 = scalar_lea.vmem %s5, %s350
        $region40: #{tpu_custom_call.1} parent=15 // pred_fallthru
          _
        // Predicated region
        $region41: #{tpu_custom_call.1} parent=15 // pred_check
          %p352 = pneg %p206
        $region42: #{tpu_custom_call.1} parent=15 // pred_check_branch
          %354 = sbr.rel (%p352) target = $region44
        $region43: #{tpu_custom_call.1} parent=15 // pred_region
          %p355 = scmp.lt.s32.totalorder %s26, 1
          %s356 = scalar_select %p355, %s26, 1
          %s357 = scalar_lea.vmem %s6, %s356
        $region44: #{tpu_custom_call.1} parent=15 // pred_fallthru
          _
        // Predicated region
        $region45: #{tpu_custom_call.1} parent=15 // pred_check
          %p358 = pneg %p232
        $region46: #{tpu_custom_call.1} parent=15 // pred_check_branch
          %360 = sbr.rel (%p358) target = $region48
        $region47: #{tpu_custom_call.1} parent=15 // pred_region
          %p361 = scmp.lt.s32.totalorder %s26, 1
          %s362 = scalar_select %p361, %s26, 1
          %s363 = smul.addr %s362, 16
          %s364 = smul.addr %s363, 4
          %s365 = scalar_lea.vmem %s7, %s364
        $region48: #{tpu_custom_call.1} parent=15 // pred_fallthru
          _
        // Predicated region
        $region49: #{tpu_custom_call.1} parent=15 // pred_check
          %p366 = pneg %p258
        $region50: #{tpu_custom_call.1} parent=15 // pred_check_branch
          %368 = sbr.rel (%p366) target = $region52
        $region51: #{tpu_custom_call.1} parent=15 // pred_region
          %p369 = scmp.lt.s32.totalorder %s26, 1
          %s370 = scalar_select %p369, %s26, 1
          %s371 = scalar_lea.vmem %s8, %s370
        $region52: #{tpu_custom_call.1} parent=15 // pred_fallthru
          _
      $region16: #{tpu_custom_call.1} parent=5 // pred_fallthru
        _
      %p372 = scmp.le.s32.totalorder 1, %s18
      %p373 = scmp.lt.s32.totalorder %s18, 5
      %p374 = pnand %p372, %p373
      %p375 = pneg %p374
      // Predicated region
      $region53: #{tpu_custom_call.1} parent=5 // pred_check
        _
      $region54: #{tpu_custom_call.1} parent=5 // pred_check_branch
        %377 = sbr.rel (%p374) target = $region56
      $region55: #{tpu_custom_call.1} parent=5 // pred_region
        %s378 = ssub.s32 %s18, 1
        %p379 = scmp.lt.s32.totalorder %s27, 1
        %s380 = scalar_select %p379, %s27, 1
        %s381 = smul.addr %s380, 8
        %s382 = scalar_lea.vmem %s0, %s381
        %p383 = pneg %p56
        %p384 = pneg %p53
        %p385 = scmp.lt.s32.totalorder %s28, 1
        %s386 = scalar_select %p385, %s28, 1
        %s387 = smul.addr %s386, 4
        %s388 = smul.addr %s387, 4
        %s389 = scalar_lea.vmem %s1, %s388
        %p390 = pneg %p82
        %p391 = pneg %p79
        %p392 = scmp.lt.s32.totalorder %s28, 1
        %s393 = scalar_select %p392, %s28, 1
        %s394 = scalar_lea.vmem %s2, %s393
        %p395 = pneg %p108
        %p396 = pneg %p105
        %p397 = scmp.lt.s32.totalorder %s28, 1
        %s398 = scalar_select %p397, %s28, 1
        %s399 = smul.addr %s398, 4
        %s400 = smul.addr %s399, 4
        %s401 = scalar_lea.vmem %s3, %s400
        %p402 = pneg %p134
        %p403 = pneg %p131
        %p404 = scmp.lt.s32.totalorder %s28, 1
        %s405 = scalar_select %p404, %s28, 1
        %s406 = scalar_lea.vmem %s4, %s405
        %p407 = pneg %p160
        %p408 = pneg %p157
        %p409 = scmp.lt.s32.totalorder %s28, 1
        %s410 = scalar_select %p409, %s28, 1
        %s411 = smul.addr %s410, 4
        %s412 = smul.addr %s411, 4
        %s413 = scalar_lea.vmem %s5, %s412
        %p414 = pneg %p186
        %p415 = pneg %p183
        %p416 = scmp.lt.s32.totalorder %s28, 1
        %s417 = scalar_select %p416, %s28, 1
        %s418 = scalar_lea.vmem %s6, %s417
        %p419 = pneg %p212
        %p420 = pneg %p209
        %p421 = scmp.lt.s32.totalorder %s28, 1
        %s422 = scalar_select %p421, %s28, 1
        %s423 = smul.addr %s422, 16
        %s424 = smul.addr %s423, 4
        %s425 = scalar_lea.vmem %s7, %s424
        %p426 = pneg %p238
        %p427 = pneg %p235
        %p428 = scmp.lt.s32.totalorder %s28, 1
        %s429 = scalar_select %p428, %s28, 1
        %s430 = scalar_lea.vmem %s8, %s429
        %p431 = pneg %p264
        %p432 = pneg %p261
        %p433 = pneg %p290
        %p434 = pneg %p287
        %s435 = sand.u32 %s277, 1
        %s436 = scalar_lea.sflag [#allocation3], %s435
        %s437 = sand.u32 %s277, 1
        %s438 = smul.addr %s437, 8
        %s439 = scalar_lea.vmem [#allocation2], %s438
        %p440 = scmp.lt.s32.totalorder %s27, 1
        %s441 = scalar_select %p440, %s27, 1
        %s442 = smul.addr %s441, 8
        %s443 = scalar_lea.vmem %s0, %s442
        %p444 = scmp.lt.s32.totalorder %s28, 1
        %s445 = scalar_select %p444, %s28, 1
        %s446 = smul.addr %s445, 4
        %s447 = smul.addr %s446, 4
        %s448 = scalar_lea.vmem %s1, %s447
        %p449 = scmp.lt.s32.totalorder %s28, 1
        %s450 = scalar_select %p449, %s28, 1
        %s451 = scalar_lea.vmem %s2, %s450
        %p452 = scmp.lt.s32.totalorder %s28, 1
        %s453 = scalar_select %p452, %s28, 1
        %s454 = smul.addr %s453, 4
        %s455 = smul.addr %s454, 4
        %s456 = scalar_lea.vmem %s3, %s455
        %p457 = scmp.lt.s32.totalorder %s28, 1
        %s458 = scalar_select %p457, %s28, 1
        %s459 = scalar_lea.vmem %s4, %s458
        %p460 = scmp.lt.s32.totalorder %s28, 1
        %s461 = scalar_select %p460, %s28, 1
        %s462 = smul.addr %s461, 4
        %s463 = smul.addr %s462, 4
        %s464 = scalar_lea.vmem %s5, %s463
        %p465 = scmp.lt.s32.totalorder %s28, 1
        %s466 = scalar_select %p465, %s28, 1
        %s467 = scalar_lea.vmem %s6, %s466
        %p468 = scmp.lt.s32.totalorder %s28, 1
        %s469 = scalar_select %p468, %s28, 1
        %s470 = smul.addr %s469, 16
        %s471 = smul.addr %s470, 4
        %s472 = scalar_lea.vmem %s7, %s471
        %p473 = scmp.lt.s32.totalorder %s28, 1
        %s474 = scalar_select %p473, %s28, 1
        %s475 = scalar_lea.vmem %s8, %s474
        %p477 = scmp.eq.s32.totalorder %s28, 0
        // Predicated region
        $region57: #{tpu_custom_call.1} parent=55 // pred_check
          %p478 = pneg %p477
        $region58: #{tpu_custom_call.1} parent=55 // pred_check_branch
          %480 = sbr.rel (%p478) target = $region60
        $region59: #{tpu_custom_call.1} parent=55 // pred_region
          %v481 = vld [vmem:[%s443] sm:$0xff]
          %vm482 = vcmask 261120
          %483 = vst.msk [vmem:[%s439] sm:$0xff] %vm482, %v481
        $region60: #{tpu_custom_call.1} parent=55 // pred_fallthru
          _
        %v484 = vld [vmem:[%s439] sm:$0xff]
        %vm485 = vcmask 261120
        %v486 = vsel %vm485, %v484, 0.0
        %487 = vadd.xlane.f32.xlu0 %v486
        %v488 = vpop.xlane.xlu0 %487
        %v489 = vrcp.pop 32.0
        %v490 = vmul.f32 %v488, %v489
        %v491 = vsub.f32 %v484, %v490
        %v492 = vmul.f32 %v491, %v491
        %v493 = vsel %vm485, %v492, 0.0
        %494 = vadd.xlane.f32.xlu0 %v493
        %v495 = vpop.xlane.xlu0 %494
        %v496 = vmul.f32 %v495, %v489
        %v497 = vadd.f32 %v496, 1e-05
        %v498 = vrsqrt.pop %v497
        %v499 = vmul.f32 %v491, %v498
        %v500 = vpack.c.bf16 %v499, %v499
        %v501 = vld [vmem:[%s448] sm:$0xf]
        %v502 = vld [vmem:[%s448 + $0x4] sm:$0xf]
        %v503 = vld [vmem:[%s448 + $0x8] sm:$0xf]
        %v504 = vld [vmem:[%s448 + $0xc] sm:$0xf]
        %v505 = vld [vmem:[%s451] sm:$0x1]
        %v507 = vlaneseq
        %v508 = vshrl.u32 %v507, 7
        %v509 = vsub.s32 0, %v508
        %v510 = vrot.slane %v505, %v509
        %v516 = vunpack.c.l.b16 %v501
        %v517 = vunpack.c.l.b16 %v502
        %v518 = vunpack.c.l.b16 %v503
        %v519 = vunpack.c.l.b16 %v504
        %v520 = vpack.c.b16 %v517, %v516
        %v521 = vpack.c.b16 %v519, %v518
        %v525 = vsel %vm485, %v500, 0
        %527 = vmatprep.subr.bf16.mxu0 0
        %528 = vmatpush1.bf16.msra.mxu0 %v520
        %529 = vmatprep.subr.bf16.mxu0 0
        %530 = vmatpush1.bf16.msra.mxu0 %v521
        %531 = vmatprep.subr.bf16.mxu0 0
        %532 = vmatpush1.bf16.msra.mxu0 0
        %533 = vmatprep.subr.bf16.mxu0 0
        %534 = vmatpush1.bf16.msra.mxu0 0
        %535 = vmatprep.subr.bf16.mxu0 0
        %536 = vmatpush1.bf16.msra.mxu0 0
        %537 = vmatprep.subr.bf16.mxu0 0
        %538 = vmatpush1.bf16.msra.mxu0 0
        %539 = vmatprep.subr.bf16.mxu0 0
        %540 = vmatpush1.bf16.msra.mxu0 0
        %541 = vmatprep.subr.bf16.mxu0 0
        %542 = vmatpush1.bf16.msra.mxu0 0
        %543 = vmatprep.subr.bf16.mxu0 0
        %544 = vmatpush1.bf16.msra.mxu0 0
        %545 = vmatprep.subr.bf16.mxu0 0
        %546 = vmatpush1.bf16.msra.mxu0 0
        %547 = vmatprep.subr.bf16.mxu0 0
        %548 = vmatpush1.bf16.msra.mxu0 0
        %549 = vmatprep.subr.bf16.mxu0 0
        %550 = vmatpush1.bf16.msra.mxu0 0
        %551 = vmatprep.subr.bf16.mxu0 0
        %552 = vmatpush1.bf16.msra.mxu0 0
        %553 = vmatprep.subr.bf16.mxu0 0
        %554 = vmatpush1.bf16.msra.mxu0 0
        %555 = vmatprep.subr.bf16.mxu0 0
        %556 = vmatpush1.bf16.msra.mxu0 0
        %557 = vmatprep.subr.bf16.mxu0 0
        %558 = vmatpush1.bf16.msra.mxu0 0
        %559 = vmatprep.mubr.bf16.mxu0 0
        %560 = vmatmul.mubr.bf16.gmra.mrb[0].mxu0 %v525
        %v561 = vpop.f32.mrb[0].mxu0
        %v562 = vadd.f32 %v510, %v561
        %v563 = vpop.f32.mrb[0].mxu0
        %v564 = vpop.f32.mrb[0].mxu0
        %v565 = vpop.f32.mrb[0].mxu0
        %566 = vdwg.mxu0
        %v567 = vpack.c.bf16 %v562, %v562
        %v568 = vlaneseq
        %v569 = vshrl.u32 %v568, 7
        %v570 = vlaneseq
        %v571 = vand.u32 %v570, 127
        %vm572 = vcmp.le.s32.totalorder %v571, %v569
        %v573 = vsel %vm572, 0.0, -1e+30
        %575 = vrot.lane.b32.xlu0 %v567, 96
        %v576 = vpop.permute.xlu0 %575
        %vm577 = vcmask 64512
        %v579 = vsel %vm577, %v567, 0
        %v582 = vsel %vm577, %v576, 0
        %584 = vmatprep.subr.bf16.mxu0 0
        %585 = vmatpush1.bf16.xpose.msra.mxu0 %v582
        %586 = vmatprep.subr.bf16.mxu0 0
        %587 = vmatpush1.bf16.xpose.msra.mxu0 0
        %588 = vmatprep.subr.bf16.mxu0 0
        %589 = vmatpush1.bf16.xpose.msra.mxu0 0
        %590 = vmatprep.subr.bf16.mxu0 0
        %591 = vmatpush1.bf16.xpose.msra.mxu0 0
        %592 = vmatprep.subr.bf16.mxu0 0
        %593 = vmatpush1.bf16.xpose.msra.mxu0 0
        %594 = vmatprep.subr.bf16.mxu0 0
        %595 = vmatpush1.bf16.xpose.msra.mxu0 0
        %596 = vmatprep.subr.bf16.mxu0 0
        %597 = vmatpush1.bf16.xpose.msra.mxu0 0
        %598 = vmatprep.subr.bf16.mxu0 0
        %599 = vmatpush1.bf16.xpose.msra.mxu0 0
        %600 = vmatprep.subr.bf16.mxu0 0
        %601 = vmatpush1.bf16.xpose.msra.mxu0 0
        %602 = vmatprep.subr.bf16.mxu0 0
        %603 = vmatpush1.bf16.xpose.msra.mxu0 0
        %604 = vmatprep.subr.bf16.mxu0 0
        %605 = vmatpush1.bf16.xpose.msra.mxu0 0
        %606 = vmatprep.subr.bf16.mxu0 0
        %607 = vmatpush1.bf16.xpose.msra.mxu0 0
        %608 = vmatprep.subr.bf16.mxu0 0
        %609 = vmatpush1.bf16.xpose.msra.mxu0 0
        %610 = vmatprep.subr.bf16.mxu0 0
        %611 = vmatpush1.bf16.xpose.msra.mxu0 0
        %612 = vmatprep.subr.bf16.mxu0 0
        %613 = vmatpush1.bf16.xpose.msra.mxu0 0
        %614 = vmatprep.subr.bf16.mxu0 0
        %615 = vmatpush1.bf16.xpose.msra.mxu0 0
        %616 = vmatprep.mubr.bf16.mxu0 0
        %617 = vmatmul.mubr.bf16.gmra.mrb[0].mxu0 %v579
        %v618 = vpop.f32.mrb[0].mxu0
        %v619 = vadd.f32 %v573, %v618
        %v620 = vpop.f32.mrb[0].mxu0
        %v621 = vpop.f32.mrb[0].mxu0
        %v622 = vpop.f32.mrb[0].mxu0
        %623 = vdwg.mxu0
        %v624 = vsel %vm577, %v619, -inf
        %625 = vmax.xlane.f32.xlu0 %v624
        %v626 = vpop.xlane.xlu0 %625
        %v627 = vsub.f32 %v619, %v626
        %v628 = vmul.f32 %v627, 1.442695
        %v629 = vpow.pop %v628
        %v630 = vsel %vm577, %v629, 0.0
        %631 = vadd.xlane.f32.xlu0 %v630
        %v632 = vpop.xlane.xlu0 %631
        %v633 = vrcp.pop %v632
        %v634 = vmul.f32 %v629, %v633
        %v635 = vpack.c.bf16 %v634, %v634
        %636 = vrot.lane.b32.xlu0 %v567, 64
        %v637 = vpop.permute.xlu0 %636
        %v639 = vsel %vm577, %v635, 0
        %vm641 = vcmask 1043456
        %v643 = vsel %vm641, %v637, 0
        %645 = vmatprep.subr.bf16.mxu0 0
        %646 = vmatpush1.bf16.msra.mxu0 %v643
        %647 = vmatprep.subr.bf16.mxu0 0
        %648 = vmatpush1.bf16.msra.mxu0 0
        %649 = vmatprep.subr.bf16.mxu0 0
        %650 = vmatpush1.bf16.msra.mxu0 0
        %651 = vmatprep.subr.bf16.mxu0 0
        %652 = vmatpush1.bf16.msra.mxu0 0
        %653 = vmatprep.subr.bf16.mxu0 0
        %654 = vmatpush1.bf16.msra.mxu0 0
        %655 = vmatprep.subr.bf16.mxu0 0
        %656 = vmatpush1.bf16.msra.mxu0 0
        %657 = vmatprep.subr.bf16.mxu0 0
        %658 = vmatpush1.bf16.msra.mxu0 0
        %659 = vmatprep.subr.bf16.mxu0 0
        %660 = vmatpush1.bf16.msra.mxu0 0
        %661 = vmatprep.subr.bf16.mxu0 0
        %662 = vmatpush1.bf16.msra.mxu0 0
        %663 = vmatprep.subr.bf16.mxu0 0
        %664 = vmatpush1.bf16.msra.mxu0 0
        %665 = vmatprep.subr.bf16.mxu0 0
        %666 = vmatpush1.bf16.msra.mxu0 0
        %667 = vmatprep.subr.bf16.mxu0 0
        %668 = vmatpush1.bf16.msra.mxu0 0
        %669 = vmatprep.subr.bf16.mxu0 0
        %670 = vmatpush1.bf16.msra.mxu0 0
        %671 = vmatprep.subr.bf16.mxu0 0
        %672 = vmatpush1.bf16.msra.mxu0 0
        %673 = vmatprep.subr.bf16.mxu0 0
        %674 = vmatpush1.bf16.msra.mxu0 0
        %675 = vmatprep.subr.bf16.mxu0 0
        %676 = vmatpush1.bf16.msra.mxu0 0
        %677 = vmatprep.mubr.bf16.mxu0 0
        %678 = vmatmul.mubr.bf16.gmra.mrb[0].mxu0 %v639
        %v679 = vpop.f32.mrb[0].mxu0
        %v680 = vadd.f32 0.0, %v679
        %v681 = vpop.f32.mrb[0].mxu0
        %v682 = vpop.f32.mrb[0].mxu0
        %v683 = vpop.f32.mrb[0].mxu0
        %684 = vdwg.mxu0
        %685 = vrot.lane.b32.xlu0 %v567, 120
        %v686 = vpop.permute.xlu0 %685
        %687 = vrot.lane.b32.xlu0 %v567, 88
        %v688 = vpop.permute.xlu0 %687
        %v690 = vsel %vm577, %v686, 0
        %v693 = vsel %vm577, %v688, 0
        %695 = vmatprep.subr.bf16.mxu0 0
        %696 = vmatpush1.bf16.xpose.msra.mxu0 %v693
        %697 = vmatprep.subr.bf16.mxu0 0
        %698 = vmatpush1.bf16.xpose.msra.mxu0 0
        %699 = vmatprep.subr.bf16.mxu0 0
        %700 = vmatpush1.bf16.xpose.msra.mxu0 0
        %701 = vmatprep.subr.bf16.mxu0 0
        %702 = vmatpush1.bf16.xpose.msra.mxu0 0
        %703 = vmatprep.subr.bf16.mxu0 0
        %704 = vmatpush1.bf16.xpose.msra.mxu0 0
        %705 = vmatprep.subr.bf16.mxu0 0
        %706 = vmatpush1.bf16.xpose.msra.mxu0 0
        %707 = vmatprep.subr.bf16.mxu0 0
        %708 = vmatpush1.bf16.xpose.msra.mxu0 0
        %709 = vmatprep.subr.bf16.mxu0 0
        %710 = vmatpush1.bf16.xpose.msra.mxu0 0
        %711 = vmatprep.subr.bf16.mxu0 0
        %712 = vmatpush1.bf16.xpose.msra.mxu0 0
        %713 = vmatprep.subr.bf16.mxu0 0
        %714 = vmatpush1.bf16.xpose.msra.mxu0 0
        %715 = vmatprep.subr.bf16.mxu0 0
        %716 = vmatpush1.bf16.xpose.msra.mxu0 0
        %717 = vmatprep.subr.bf16.mxu0 0
        %718 = vmatpush1.bf16.xpose.msra.mxu0 0
        %719 = vmatprep.subr.bf16.mxu0 0
        %720 = vmatpush1.bf16.xpose.msra.mxu0 0
        %721 = vmatprep.subr.bf16.mxu0 0
        %722 = vmatpush1.bf16.xpose.msra.mxu0 0
        %723 = vmatprep.subr.bf16.mxu0 0
        %724 = vmatpush1.bf16.xpose.msra.mxu0 0
        %725 = vmatprep.subr.bf16.mxu0 0
        %726 = vmatpush1.bf16.xpose.msra.mxu0 0
        %727 = vmatprep.mubr.bf16.mxu0 0
        %728 = vmatmul.mubr.bf16.gmra.mrb[0].mxu0 %v690
        %v729 = vpop.f32.mrb[0].mxu0
        %v730 = vadd.f32 %v573, %v729
        %v731 = vpop.f32.mrb[0].mxu0
        %v732 = vpop.f32.mrb[0].mxu0
        %v733 = vpop.f32.mrb[0].mxu0
        %734 = vdwg.mxu0
        %v735 = vsel %vm577, %v730, -inf
        %736 = vmax.xlane.f32.xlu0 %v735
        %v737 = vpop.xlane.xlu0 %736
        %v738 = vsub.f32 %v730, %v737
        %v739 = vmul.f32 %v738, 1.442695
        %v740 = vpow.pop %v739
        %v741 = vsel %vm577, %v740, 0.0
        %742 = vadd.xlane.f32.xlu0 %v741
        %v743 = vpop.xlane.xlu0 %742
        %v744 = vrcp.pop %v743
        %v745 = vmul.f32 %v740, %v744
        %v746 = vpack.c.bf16 %v745, %v745
        %747 = vrot.lane.b32.xlu0 %v567, 56
        %v748 = vpop.permute.xlu0 %747
        %v750 = vsel %vm577, %v746, 0
        %v753 = vsel %vm641, %v748, 0
        %755 = vmatprep.subr.bf16.mxu0 0
        %756 = vmatpush1.bf16.msra.mxu0 %v753
        %757 = vmatprep.subr.bf16.mxu0 0
        %758 = vmatpush1.bf16.msra.mxu0 0
        %759 = vmatprep.subr.bf16.mxu0 0
        %760 = vmatpush1.bf16.msra.mxu0 0
        %761 = vmatprep.subr.bf16.mxu0 0
        %762 = vmatpush1.bf16.msra.mxu0 0
        %763 = vmatprep.subr.bf16.mxu0 0
        %764 = vmatpush1.bf16.msra.mxu0 0
        %765 = vmatprep.subr.bf16.mxu0 0
        %766 = vmatpush1.bf16.msra.mxu0 0
        %767 = vmatprep.subr.bf16.mxu0 0
        %768 = vmatpush1.bf16.msra.mxu0 0
        %769 = vmatprep.subr.bf16.mxu0 0
        %770 = vmatpush1.bf16.msra.mxu0 0
        %771 = vmatprep.subr.bf16.mxu0 0
        %772 = vmatpush1.bf16.msra.mxu0 0
        %773 = vmatprep.subr.bf16.mxu0 0
        %774 = vmatpush1.bf16.msra.mxu0 0
        %775 = vmatprep.subr.bf16.mxu0 0
        %776 = vmatpush1.bf16.msra.mxu0 0
        %777 = vmatprep.subr.bf16.mxu0 0
        %778 = vmatpush1.bf16.msra.mxu0 0
        %779 = vmatprep.subr.bf16.mxu0 0
        %780 = vmatpush1.bf16.msra.mxu0 0
        %781 = vmatprep.subr.bf16.mxu0 0
        %782 = vmatpush1.bf16.msra.mxu0 0
        %783 = vmatprep.subr.bf16.mxu0 0
        %784 = vmatpush1.bf16.msra.mxu0 0
        %785 = vmatprep.subr.bf16.mxu0 0
        %786 = vmatpush1.bf16.msra.mxu0 0
        %787 = vmatprep.mubr.bf16.mxu0 0
        %788 = vmatmul.mubr.bf16.gmra.mrb[0].mxu0 %v750
        %v789 = vpop.f32.mrb[0].mxu0
        %v790 = vadd.f32 0.0, %v789
        %v791 = vpop.f32.mrb[0].mxu0
        %v792 = vpop.f32.mrb[0].mxu0
        %v793 = vpop.f32.mrb[0].mxu0
        %794 = vdwg.mxu0
        %795 = vrot.lane.b32.xlu0 %v567, 112
        %v796 = vpop.permute.xlu0 %795
        %797 = vrot.lane.b32.xlu0 %v567, 80
        %v798 = vpop.permute.xlu0 %797
        %v800 = vsel %vm577, %v796, 0
        %v803 = vsel %vm577, %v798, 0
        %805 = vmatprep.subr.bf16.mxu0 0
        %806 = vmatpush1.bf16.xpose.msra.mxu0 %v803
        %807 = vmatprep.subr.bf16.mxu0 0
        %808 = vmatpush1.bf16.xpose.msra.mxu0 0
        %809 = vmatprep.subr.bf16.mxu0 0
        %810 = vmatpush1.bf16.xpose.msra.mxu0 0
        %811 = vmatprep.subr.bf16.mxu0 0
        %812 = vmatpush1.bf16.xpose.msra.mxu0 0
        %813 = vmatprep.subr.bf16.mxu0 0
        %814 = vmatpush1.bf16.xpose.msra.mxu0 0
        %815 = vmatprep.subr.bf16.mxu0 0
        %816 = vmatpush1.bf16.xpose.msra.mxu0 0
        %817 = vmatprep.subr.bf16.mxu0 0
        %818 = vmatpush1.bf16.xpose.msra.mxu0 0
        %819 = vmatprep.subr.bf16.mxu0 0
        %820 = vmatpush1.bf16.xpose.msra.mxu0 0
        %821 = vmatprep.subr.bf16.mxu0 0
        %822 = vmatpush1.bf16.xpose.msra.mxu0 0
        %823 = vmatprep.subr.bf16.mxu0 0
        %824 = vmatpush1.bf16.xpose.msra.mxu0 0
        %825 = vmatprep.subr.bf16.mxu0 0
        %826 = vmatpush1.bf16.xpose.msra.mxu0 0
        %827 = vmatprep.subr.bf16.mxu0 0
        %828 = vmatpush1.bf16.xpose.msra.mxu0 0
        %829 = vmatprep.subr.bf16.mxu0 0
        %830 = vmatpush1.bf16.xpose.msra.mxu0 0
        %831 = vmatprep.subr.bf16.mxu0 0
        %832 = vmatpush1.bf16.xpose.msra.mxu0 0
        %833 = vmatprep.subr.bf16.mxu0 0
        %834 = vmatpush1.bf16.xpose.msra.mxu0 0
        %835 = vmatprep.subr.bf16.mxu0 0
        %836 = vmatpush1.bf16.xpose.msra.mxu0 0
        %837 = vmatprep.mubr.bf16.mxu0 0
        %838 = vmatmul.mubr.bf16.gmra.mrb[0].mxu0 %v800
        %v839 = vpop.f32.mrb[0].mxu0
        %v840 = vadd.f32 %v573, %v839
        %v841 = vpop.f32.mrb[0].mxu0
        %v842 = vpop.f32.mrb[0].mxu0
        %v843 = vpop.f32.mrb[0].mxu0
        %844 = vdwg.mxu0
        %v845 = vsel %vm577, %v840, -inf
        %846 = vmax.xlane.f32.xlu0 %v845
        %v847 = vpop.xlane.xlu0 %846
        %v848 = vsub.f32 %v840, %v847
        %v849 = vmul.f32 %v848, 1.442695
        %v850 = vpow.pop %v849
        %v851 = vsel %vm577, %v850, 0.0
        %852 = vadd.xlane.f32.xlu0 %v851
        %v853 = vpop.xlane.xlu0 %852
        %v854 = vrcp.pop %v853
        %v855 = vmul.f32 %v850, %v854
        %v856 = vpack.c.bf16 %v855, %v855
        %857 = vrot.lane.b32.xlu0 %v567, 48
        %v858 = vpop.permute.xlu0 %857
        %v860 = vsel %vm577, %v856, 0
        %v863 = vsel %vm641, %v858, 0
        %865 = vmatprep.subr.bf16.mxu0 0
        %866 = vmatpush1.bf16.msra.mxu0 %v863
        %867 = vmatprep.subr.bf16.mxu0 0
        %868 = vmatpush1.bf16.msra.mxu0 0
        %869 = vmatprep.subr.bf16.mxu0 0
        %870 = vmatpush1.bf16.msra.mxu0 0
        %871 = vmatprep.subr.bf16.mxu0 0
        %872 = vmatpush1.bf16.msra.mxu0 0
        %873 = vmatprep.subr.bf16.mxu0 0
        %874 = vmatpush1.bf16.msra.mxu0 0
        %875 = vmatprep.subr.bf16.mxu0 0
        %876 = vmatpush1.bf16.msra.mxu0 0
        %877 = vmatprep.subr.bf16.mxu0 0
        %878 = vmatpush1.bf16.msra.mxu0 0
        %879 = vmatprep.subr.bf16.mxu0 0
        %880 = vmatpush1.bf16.msra.mxu0 0
        %881 = vmatprep.subr.bf16.mxu0 0
        %882 = vmatpush1.bf16.msra.mxu0 0
        %883 = vmatprep.subr.bf16.mxu0 0
        %884 = vmatpush1.bf16.msra.mxu0 0
        %885 = vmatprep.subr.bf16.mxu0 0
        %886 = vmatpush1.bf16.msra.mxu0 0
        %887 = vmatprep.subr.bf16.mxu0 0
        %888 = vmatpush1.bf16.msra.mxu0 0
        %889 = vmatprep.subr.bf16.mxu0 0
        %890 = vmatpush1.bf16.msra.mxu0 0
        %891 = vmatprep.subr.bf16.mxu0 0
        %892 = vmatpush1.bf16.msra.mxu0 0
        %893 = vmatprep.subr.bf16.mxu0 0
        %894 = vmatpush1.bf16.msra.mxu0 0
        %895 = vmatprep.subr.bf16.mxu0 0
        %896 = vmatpush1.bf16.msra.mxu0 0
        %897 = vmatprep.mubr.bf16.mxu0 0
        %898 = vmatmul.mubr.bf16.gmra.mrb[0].mxu0 %v860
        %v899 = vpop.f32.mrb[0].mxu0
        %v900 = vadd.f32 0.0, %v899
        %v901 = vpop.f32.mrb[0].mxu0
        %v902 = vpop.f32.mrb[0].mxu0
        %v903 = vpop.f32.mrb[0].mxu0
        %904 = vdwg.mxu0
        %905 = vrot.lane.b32.xlu0 %v567, 104
        %v906 = vpop.permute.xlu0 %905
        %907 = vrot.lane.b32.xlu0 %v567, 72
        %v908 = vpop.permute.xlu0 %907
        %v910 = vsel %vm577, %v906, 0
        %v913 = vsel %vm577, %v908, 0
        %915 = vmatprep.subr.bf16.mxu0 0
        %916 = vmatpush1.bf16.xpose.msra.mxu0 %v913
        %917 = vmatprep.subr.bf16.mxu0 0
        %918 = vmatpush1.bf16.xpose.msra.mxu0 0
        %919 = vmatprep.subr.bf16.mxu0 0
        %920 = vmatpush1.bf16.xpose.msra.mxu0 0
        %921 = vmatprep.subr.bf16.mxu0 0
        %922 = vmatpush1.bf16.xpose.msra.mxu0 0
        %923 = vmatprep.subr.bf16.mxu0 0
        %924 = vmatpush1.bf16.xpose.msra.mxu0 0
        %925 = vmatprep.subr.bf16.mxu0 0
        %926 = vmatpush1.bf16.xpose.msra.mxu0 0
        %927 = vmatprep.subr.bf16.mxu0 0
        %928 = vmatpush1.bf16.xpose.msra.mxu0 0
        %929 = vmatprep.subr.bf16.mxu0 0
        %930 = vmatpush1.bf16.xpose.msra.mxu0 0
        %931 = vmatprep.subr.bf16.mxu0 0
        %932 = vmatpush1.bf16.xpose.msra.mxu0 0
        %933 = vmatprep.subr.bf16.mxu0 0
        %934 = vmatpush1.bf16.xpose.msra.mxu0 0
        %935 = vmatprep.subr.bf16.mxu0 0
        %936 = vmatpush1.bf16.xpose.msra.mxu0 0
        %937 = vmatprep.subr.bf16.mxu0 0
        %938 = vmatpush1.bf16.xpose.msra.mxu0 0
        %939 = vmatprep.subr.bf16.mxu0 0
        %940 = vmatpush1.bf16.xpose.msra.mxu0 0
        %941 = vmatprep.subr.bf16.mxu0 0
        %942 = vmatpush1.bf16.xpose.msra.mxu0 0
        %943 = vmatprep.subr.bf16.mxu0 0
        %944 = vmatpush1.bf16.xpose.msra.mxu0 0
        %945 = vmatprep.subr.bf16.mxu0 0
        %946 = vmatpush1.bf16.xpose.msra.mxu0 0
        %947 = vmatprep.mubr.bf16.mxu0 0
        %948 = vmatmul.mubr.bf16.gmra.mrb[0].mxu0 %v910
        %v949 = vpop.f32.mrb[0].mxu0
        %v950 = vadd.f32 %v573, %v949
        %v951 = vpop.f32.mrb[0].mxu0
        %v952 = vpop.f32.mrb[0].mxu0
        %v953 = vpop.f32.mrb[0].mxu0
        %954 = vdwg.mxu0
        %v955 = vsel %vm577, %v950, -inf
        %956 = vmax.xlane.f32.xlu0 %v955
        %v957 = vpop.xlane.xlu0 %956
        %v958 = vsub.f32 %v950, %v957
        %v959 = vmul.f32 %v958, 1.442695
        %v960 = vpow.pop %v959
        %v961 = vsel %vm577, %v960, 0.0
        %962 = vadd.xlane.f32.xlu0 %v961
        %v963 = vpop.xlane.xlu0 %962
        %v964 = vrcp.pop %v963
        %v965 = vmul.f32 %v960, %v964
        %v966 = vpack.c.bf16 %v965, %v965
        %967 = vrot.lane.b32.xlu0 %v567, 40
        %v968 = vpop.permute.xlu0 %967
        %v970 = vsel %vm577, %v966, 0
        %v973 = vsel %vm641, %v968, 0
        %975 = vmatprep.subr.bf16.mxu0 0
        %976 = vmatpush1.bf16.msra.mxu0 %v973
        %977 = vmatprep.subr.bf16.mxu0 0
        %978 = vmatpush1.bf16.msra.mxu0 0
        %979 = vmatprep.subr.bf16.mxu0 0
        %980 = vmatpush1.bf16.msra.mxu0 0
        %981 = vmatprep.subr.bf16.mxu0 0
        %982 = vmatpush1.bf16.msra.mxu0 0
        %983 = vmatprep.subr.bf16.mxu0 0
        %984 = vmatpush1.bf16.msra.mxu0 0
        %985 = vmatprep.subr.bf16.mxu0 0
        %986 = vmatpush1.bf16.msra.mxu0 0
        %987 = vmatprep.subr.bf16.mxu0 0
        %988 = vmatpush1.bf16.msra.mxu0 0
        %989 = vmatprep.subr.bf16.mxu0 0
        %990 = vmatpush1.bf16.msra.mxu0 0
        %991 = vmatprep.subr.bf16.mxu0 0
        %992 = vmatpush1.bf16.msra.mxu0 0
        %993 = vmatprep.subr.bf16.mxu0 0
        %994 = vmatpush1.bf16.msra.mxu0 0
        %995 = vmatprep.subr.bf16.mxu0 0
        %996 = vmatpush1.bf16.msra.mxu0 0
        %997 = vmatprep.subr.bf16.mxu0 0
        %998 = vmatpush1.bf16.msra.mxu0 0
        %999 = vmatprep.subr.bf16.mxu0 0
        %1000 = vmatpush1.bf16.msra.mxu0 0
        %1001 = vmatprep.subr.bf16.mxu0 0
        %1002 = vmatpush1.bf16.msra.mxu0 0
        %1003 = vmatprep.subr.bf16.mxu0 0
        %1004 = vmatpush1.bf16.msra.mxu0 0
        %1005 = vmatprep.subr.bf16.mxu0 0
        %1006 = vmatpush1.bf16.msra.mxu0 0
        %1007 = vmatprep.mubr.bf16.mxu0 0
        %1008 = vmatmul.mubr.bf16.gmra.mrb[0].mxu0 %v970
        %v1009 = vpop.f32.mrb[0].mxu0
        %v1010 = vadd.f32 0.0, %v1009
        %v1011 = vpop.f32.mrb[0].mxu0
        %v1012 = vpop.f32.mrb[0].mxu0
        %v1013 = vpop.f32.mrb[0].mxu0
        %1014 = vdwg.mxu0
        %1016 = vrot.lane.b32.xlu0 %v790, 8
        %v1017 = vpop.permute.xlu0 %1016
        %1020 = vrot.lane.b32.xlu0 %v900, 16
        %v1021 = vpop.permute.xlu0 %1020
        %1024 = vrot.lane.b32.xlu0 %v1010, 24
        %v1025 = vpop.permute.xlu0 %1024
        %v1027 = vsel %vm577, %v680, %v1017
        %vm1028 = vcmask 130048
        %v1029 = vsel %vm1028, %v1027, %v1021
        %vm1030 = vcmask 195584
        %v1031 = vsel %vm1030, %v1029, %v1025
        %v1032 = vpack.c.bf16 %v1031, %v1031
        %v1033 = vld [vmem:[%s456] sm:$0xf]
        %v1034 = vld [vmem:[%s456 + $0x4] sm:$0xf]
        %v1035 = vld [vmem:[%s456 + $0x8] sm:$0xf]
        %v1036 = vld [vmem:[%s456 + $0xc] sm:$0xf]
        %v1037 = vld [vmem:[%s459] sm:$0x1]
        %v1039 = vlaneseq
        %v1040 = vshrl.u32 %v1039, 7
        %v1041 = vsub.s32 0, %v1040
        %v1042 = vrot.slane %v1037, %v1041
        %v1048 = vunpack.c.l.b16 %v1033
        %v1049 = vunpack.c.l.b16 %v1034
        %v1050 = vunpack.c.l.b16 %v1035
        %v1051 = vunpack.c.l.b16 %v1036
        %v1052 = vpack.c.b16 %v1049, %v1048
        %v1053 = vpack.c.b16 %v1051, %v1050
        %v1057 = vsel %vm485, %v1032, 0
        %1059 = vmatprep.subr.bf16.mxu0 0
        %1060 = vmatpush1.bf16.msra.mxu0 %v1052
        %1061 = vmatprep.subr.bf16.mxu0 0
        %1062 = vmatpush1.bf16.msra.mxu0 %v1053
        %1063 = vmatprep.subr.bf16.mxu0 0
        %1064 = vmatpush1.bf16.msra.mxu0 0
        %1065 = vmatprep.subr.bf16.mxu0 0
        %1066 = vmatpush1.bf16.msra.mxu0 0
        %1067 = vmatprep.subr.bf16.mxu0 0
        %1068 = vmatpush1.bf16.msra.mxu0 0
        %1069 = vmatprep.subr.bf16.mxu0 0
        %1070 = vmatpush1.bf16.msra.mxu0 0
        %1071 = vmatprep.subr.bf16.mxu0 0
        %1072 = vmatpush1.bf16.msra.mxu0 0
        %1073 = vmatprep.subr.bf16.mxu0 0
        %1074 = vmatpush1.bf16.msra.mxu0 0
        %1075 = vmatprep.subr.bf16.mxu0 0
        %1076 = vmatpush1.bf16.msra.mxu0 0
        %1077 = vmatprep.subr.bf16.mxu0 0
        %1078 = vmatpush1.bf16.msra.mxu0 0
        %1079 = vmatprep.subr.bf16.mxu0 0
        %1080 = vmatpush1.bf16.msra.mxu0 0
        %1081 = vmatprep.subr.bf16.mxu0 0
        %1082 = vmatpush1.bf16.msra.mxu0 0
        %1083 = vmatprep.subr.bf16.mxu0 0
        %1084 = vmatpush1.bf16.msra.mxu0 0
        %1085 = vmatprep.subr.bf16.mxu0 0
        %1086 = vmatpush1.bf16.msra.mxu0 0
        %1087 = vmatprep.subr.bf16.mxu0 0
        %1088 = vmatpush1.bf16.msra.mxu0 0
        %1089 = vmatprep.subr.bf16.mxu0 0
        %1090 = vmatpush1.bf16.msra.mxu0 0
        %1091 = vmatprep.mubr.bf16.mxu0 0
        %1092 = vmatmul.mubr.bf16.gmra.mrb[0].mxu0 %v1057
        %v1093 = vpop.f32.mrb[0].mxu0
        %v1094 = vadd.f32 %v1042, %v1093
        %v1095 = vpop.f32.mrb[0].mxu0
        %v1096 = vpop.f32.mrb[0].mxu0
        %v1097 = vpop.f32.mrb[0].mxu0
        %1098 = vdwg.mxu0
        %v1099 = vadd.f32 %v484, %v1094
        %v1100 = vsel %vm485, %v1099, 0.0
        %1101 = vadd.xlane.f32.xlu0 %v1100
        %v1102 = vpop.xlane.xlu0 %1101
        %v1103 = vmul.f32 %v1102, %v489
        %v1104 = vsub.f32 %v1099, %v1103
        %v1105 = vmul.f32 %v1104, %v1104
        %v1106 = vsel %vm485, %v1105, 0.0
        %1107 = vadd.xlane.f32.xlu0 %v1106
        %v1108 = vpop.xlane.xlu0 %1107
        %v1109 = vmul.f32 %v1108, %v489
        %v1110 = vadd.f32 %v1109, 1e-05
        %v1111 = vrsqrt.pop %v1110
        %v1112 = vmul.f32 %v1104, %v1111
        %v1113 = vpack.c.bf16 %v1112, %v1112
        %v1114 = vld [vmem:[%s464] sm:$0xf]
        %v1115 = vld [vmem:[%s464 + $0x4] sm:$0xf]
        %v1116 = vld [vmem:[%s464 + $0x8] sm:$0xf]
        %v1117 = vld [vmem:[%s464 + $0xc] sm:$0xf]
        %v1118 = vld [vmem:[%s467] sm:$0x1]
        %v1120 = vlaneseq
        %v1121 = vshrl.u32 %v1120, 7
        %v1122 = vsub.s32 0, %v1121
        %v1123 = vrot.slane %v1118, %v1122
        %v1129 = vunpack.c.l.b16 %v1114
        %v1130 = vunpack.c.l.b16 %v1115
        %v1131 = vunpack.c.l.b16 %v1116
        %v1132 = vunpack.c.l.b16 %v1117
        %v1133 = vpack.c.b16 %v1130, %v1129
        %v1134 = vpack.c.b16 %v1132, %v1131
        %v1138 = vsel %vm485, %v1113, 0
        %1140 = vmatprep.subr.bf16.mxu0 0
        %1141 = vmatpush1.bf16.msra.mxu0 %v1133
        %1142 = vmatprep.subr.bf16.mxu0 0
        %1143 = vmatpush1.bf16.msra.mxu0 %v1134
        %1144 = vmatprep.subr.bf16.mxu0 0
        %1145 = vmatpush1.bf16.msra.mxu0 0
        %1146 = vmatprep.subr.bf16.mxu0 0
        %1147 = vmatpush1.bf16.msra.mxu0 0
        %1148 = vmatprep.subr.bf16.mxu0 0
        %1149 = vmatpush1.bf16.msra.mxu0 0
        %1150 = vmatprep.subr.bf16.mxu0 0
        %1151 = vmatpush1.bf16.msra.mxu0 0
        %1152 = vmatprep.subr.bf16.mxu0 0
        %1153 = vmatpush1.bf16.msra.mxu0 0
        %1154 = vmatprep.subr.bf16.mxu0 0
        %1155 = vmatpush1.bf16.msra.mxu0 0
        %1156 = vmatprep.subr.bf16.mxu0 0
        %1157 = vmatpush1.bf16.msra.mxu0 0
        %1158 = vmatprep.subr.bf16.mxu0 0
        %1159 = vmatpush1.bf16.msra.mxu0 0
        %1160 = vmatprep.subr.bf16.mxu0 0
        %1161 = vmatpush1.bf16.msra.mxu0 0
        %1162 = vmatprep.subr.bf16.mxu0 0
        %1163 = vmatpush1.bf16.msra.mxu0 0
        %1164 = vmatprep.subr.bf16.mxu0 0
        %1165 = vmatpush1.bf16.msra.mxu0 0
        %1166 = vmatprep.subr.bf16.mxu0 0
        %1167 = vmatpush1.bf16.msra.mxu0 0
        %1168 = vmatprep.subr.bf16.mxu0 0
        %1169 = vmatpush1.bf16.msra.mxu0 0
        %1170 = vmatprep.subr.bf16.mxu0 0
        %1171 = vmatpush1.bf16.msra.mxu0 0
        %1172 = vmatprep.mubr.bf16.mxu0 0
        %1173 = vmatmul.mubr.bf16.gmra.mrb[0].mxu0 %v1138
        %v1174 = vpop.f32.mrb[0].mxu0
        %v1175 = vadd.f32 %v1123, %v1174
        %v1176 = vpop.f32.mrb[0].mxu0
        %v1177 = vpop.f32.mrb[0].mxu0
        %v1178 = vpop.f32.mrb[0].mxu0
        %1179 = vdwg.mxu0
        %v1180 = vmul.f32 %v1175, 0.70710677
        %v1181 = vand.u32 2147483647, %v1180
        %v1182 = vmul.f32 %v1181, 0.3275911
        %v1183 = vadd.f32 %v1182, 1.0
        %v1184 = vrcp.pop %v1183
        %v1185 = vmul.f32 %v1184, 1.0614054
        %v1186 = vadd.f32 %v1185, -1.4531521
        %v1187 = vmul.f32 %v1184, %v1186
        %v1188 = vadd.f32 %v1187, 1.4214138
        %v1189 = vmul.f32 %v1184, %v1188
        %v1190 = vadd.f32 %v1189, -0.28449672
        %v1191 = vmul.f32 %v1184, %v1190
        %v1192 = vadd.f32 %v1191, 0.2548296
        %v1193 = vmul.f32 %v1184, %v1192
        %v1194 = vsub.f32 0.0, %v1181
        %v1195 = vmul.f32 %v1194, %v1181
        %v1196 = vmul.f32 %v1195, 1.442695
        %v1197 = vpow.pop %v1196
        %v1198 = vmul.f32 %v1193, %v1197
        %v1199 = vsub.f32 1.0, %v1198
        %vm1200 = vcmp.lt.f32.partialorder %v1180, 0.0
        %v1201 = vsub.f32 0.0, %v1199
        %v1202 = vsel %vm1200, %v1201, %v1199
        %v1203 = vmul.f32 %v1175, 0.5
        %v1204 = vadd.f32 %v1202, 1.0
        %v1205 = vmul.f32 %v1203, %v1204
        %v1206 = vpack.c.bf16 %v1205, %v1205
        %v1207 = vld [vmem:[%s472] sm:$0xf]
        %v1208 = vld [vmem:[%s472 + $0x4] sm:$0xf]
        %v1209 = vld [vmem:[%s472 + $0x8] sm:$0xf]
        %v1210 = vld [vmem:[%s472 + $0xc] sm:$0xf]
        %v1211 = vld [vmem:[%s472 + $0x10] sm:$0xf]
        %v1212 = vld [vmem:[%s472 + $0x14] sm:$0xf]
        %v1213 = vld [vmem:[%s472 + $0x18] sm:$0xf]
        %v1214 = vld [vmem:[%s472 + $0x1c] sm:$0xf]
        %v1215 = vld [vmem:[%s472 + $0x20] sm:$0xf]
        %v1216 = vld [vmem:[%s472 + $0x24] sm:$0xf]
        %v1217 = vld [vmem:[%s472 + $0x28] sm:$0xf]
        %v1218 = vld [vmem:[%s472 + $0x2c] sm:$0xf]
        %v1219 = vld [vmem:[%s472 + $0x30] sm:$0xf]
        %v1220 = vld [vmem:[%s472 + $0x34] sm:$0xf]
        %v1221 = vld [vmem:[%s472 + $0x38] sm:$0xf]
        %v1222 = vld [vmem:[%s472 + $0x3c] sm:$0xf]
        %v1223 = vld [vmem:[%s475] sm:$0x1]
        %v1225 = vlaneseq
        %v1226 = vshrl.u32 %v1225, 7
        %v1227 = vsub.s32 0, %v1226
        %v1228 = vrot.slane %v1223, %v1227
        %v1246 = vunpack.c.l.b16 %v1207
        %v1247 = vunpack.c.l.b16 %v1208
        %v1248 = vunpack.c.l.b16 %v1209
        %v1249 = vunpack.c.l.b16 %v1210
        %v1250 = vunpack.c.l.b16 %v1211
        %v1251 = vunpack.c.l.b16 %v1212
        %v1252 = vunpack.c.l.b16 %v1213
        %v1253 = vunpack.c.l.b16 %v1214
        %v1254 = vunpack.c.l.b16 %v1215
        %v1255 = vunpack.c.l.b16 %v1216
        %v1256 = vunpack.c.l.b16 %v1217
        %v1257 = vunpack.c.l.b16 %v1218
        %v1258 = vunpack.c.l.b16 %v1219
        %v1259 = vunpack.c.l.b16 %v1220
        %v1260 = vunpack.c.l.b16 %v1221
        %v1261 = vunpack.c.l.b16 %v1222
        %v1262 = vpack.c.b16 %v1247, %v1246
        %v1263 = vpack.c.b16 %v1249, %v1248
        %v1264 = vpack.c.b16 %v1251, %v1250
        %v1265 = vpack.c.b16 %v1253, %v1252
        %v1266 = vpack.c.b16 %v1255, %v1254
        %v1267 = vpack.c.b16 %v1257, %v1256
        %v1268 = vpack.c.b16 %v1259, %v1258
        %v1269 = vpack.c.b16 %v1261, %v1260
        %1278 = vmatprep.subr.bf16.mxu0 0
        %1279 = vmatpush1.bf16.msra.mxu0 %v1262
        %1280 = vmatprep.subr.bf16.mxu0 0
        %1281 = vmatpush1.bf16.msra.mxu0 %v1263
        %1282 = vmatprep.subr.bf16.mxu0 0
        %1283 = vmatpush1.bf16.msra.mxu0 %v1264
        %1284 = vmatprep.subr.bf16.mxu0 0
        %1285 = vmatpush1.bf16.msra.mxu0 %v1265
        %1286 = vmatprep.subr.bf16.mxu0 0
        %1287 = vmatpush1.bf16.msra.mxu0 %v1266
        %1288 = vmatprep.subr.bf16.mxu0 0
        %1289 = vmatpush1.bf16.msra.mxu0 %v1267
        %1290 = vmatprep.subr.bf16.mxu0 0
        %1291 = vmatpush1.bf16.msra.mxu0 %v1268
        %1292 = vmatprep.subr.bf16.mxu0 0
        %1293 = vmatpush1.bf16.msra.mxu0 %v1269
        %1294 = vmatprep.subr.bf16.mxu0 0
        %1295 = vmatpush1.bf16.msra.mxu0 0
        %1296 = vmatprep.subr.bf16.mxu0 0
        %1297 = vmatpush1.bf16.msra.mxu0 0
        %1298 = vmatprep.subr.bf16.mxu0 0
        %1299 = vmatpush1.bf16.msra.mxu0 0
        %1300 = vmatprep.subr.bf16.mxu0 0
        %1301 = vmatpush1.bf16.msra.mxu0 0
        %1302 = vmatprep.subr.bf16.mxu0 0
        %1303 = vmatpush1.bf16.msra.mxu0 0
        %1304 = vmatprep.subr.bf16.mxu0 0
        %1305 = vmatpush1.bf16.msra.mxu0 0
        %1306 = vmatprep.subr.bf16.mxu0 0
        %1307 = vmatpush1.bf16.msra.mxu0 0
        %1308 = vmatprep.subr.bf16.mxu0 0
        %1309 = vmatpush1.bf16.msra.mxu0 0
        %1310 = vmatprep.mubr.bf16.mxu0 0
        %1311 = vmatmul.mubr.bf16.gmra.mrb[0].mxu0 %v1206
        %v1312 = vpop.f32.mrb[0].mxu0
        %v1313 = vadd.f32 %v1228, %v1312
        %v1314 = vpop.f32.mrb[0].mxu0
        %v1315 = vpop.f32.mrb[0].mxu0
        %v1316 = vpop.f32.mrb[0].mxu0
        %1317 = vdwg.mxu0
        %v1318 = vadd.f32 %v1099, %v1313
        %1319 = vst.msk [vmem:[%s439] sm:$0xff] %vm485, %v1318
        %s1320 = sand.u32 %s277, 1
        %s1321 = scalar_lea.sflag [#allocation3], %s1320
        %s1322 = sand.u32 %s277, 1
        %s1323 = smul.addr %s1322, 8
        %s1324 = scalar_lea.vmem [#allocation2], %s1323
        // Predicated region
        $region61: #{tpu_custom_call.1} parent=55 // pred_check
          %p1325 = pneg %p287
        $region62: #{tpu_custom_call.1} parent=55 // pred_check_branch
          %1327 = sbr.rel (%p1325) target = $region64
        $region63: #{tpu_custom_call.1} parent=55 // pred_region
          %s1329 = ssub.s32 128, 128
          %1330 = vsyncadd %s1321, %s1329
          %s1331 = smul.addr %s27, 128
          %s1332 = scalar_lea.hbm %s9, %s1331
          %s1334 = sshll.u32 %s1324, 4
          %s1335 = int_to_ptr.vmem [resolvable:$true] %s1334
          %1337 = dma.vmem_to_hbm [thread:$0]  %s1335, 128, %s1332, %s1321
        $region64: #{tpu_custom_call.1} parent=55 // pred_fallthru
          _
      $region56: #{tpu_custom_call.1} parent=5 // pred_fallthru
        _
      %p1338 = scmp.le.s32.totalorder 2, %s18
      // Predicated region
      $region65: #{tpu_custom_call.1} parent=5 // pred_check
        %p1339 = pneg %p1338
      $region66: #{tpu_custom_call.1} parent=5 // pred_check_branch
        %1341 = sbr.rel (%p1339) target = $region68
      $region67: #{tpu_custom_call.1} parent=5 // pred_region
        %s1342 = ssub.s32 %s18, 2
        // Predicated region
        $region69: #{tpu_custom_call.1} parent=67 // pred_check
          %p1343 = pneg %p293
        $region70: #{tpu_custom_call.1} parent=67 // pred_check_branch
          %1345 = sbr.rel (%p1343) target = $region72
        $region71: #{tpu_custom_call.1} parent=67 // pred_region
          %s1346 = sand.u32 %s278, 1
          %s1347 = scalar_lea.sflag [#allocation3], %s1346
          %s1348 = sand.u32 %s278, 1
          %s1349 = smul.addr %s1348, 8
          %s1350 = scalar_lea.vmem [#allocation2], %s1349
          %1351 = dma.done %s1347, 128
        $region72: #{tpu_custom_call.1} parent=67 // pred_fallthru
          _
      $region68: #{tpu_custom_call.1} parent=5 // pred_fallthru
        _
    $region6: #{tpu_custom_call.1} parent=1 // loop_footer
      %s22 = sadd.s32 1, %s18
    $region7: #{tpu_custom_call.1} parent=1 // loop_footer_branch
      %17 = sbr.rel target = $region3
    $region8: #{tpu_custom_call.1} parent=1 // loop_exit
      _
    %1352 = vsyncpa [#allocation3], 1
    %s1353 = scalar_lea.sflag [#allocation3], 1
    %1354 = vsyncpa %s1353, 1

</llo_original>
